<compile_context>
chip_gen: v7x
topology: tpu7x:2x2x1
jax: 0.10.0
libtpu: 0.0.40
codegen_flags: <defaults>
</compile_context>

<pallas_src>
import functools

import jax
import jax.numpy as jnp
from jax.experimental import pallas as pl
from jax.experimental.pallas import tpu as pltpu


# --------------------------- device / budget helpers --------------------------
@functools.lru_cache(maxsize=None)
def _vmem_physical_bytes():
    """Per-core VMEM capacity; conservative (v7x, 64 MiB) when unknown."""
    try:
        info = pltpu.get_tpu_info()
        for name in ("vmem_capacity_bytes", "vmem_bytes", "vmem_size_bytes"):
            cap = getattr(info, name, None)
            if cap:
                return int(cap)
    except Exception:
        pass
    return 64 << 20


def _vmem_budget_bytes():
    # Leave 25% headroom for Mosaic internal scratch / semaphores / pipeline state.
    return int(_vmem_physical_bytes() * 3 // 4)


# ------------------------------ tiling helpers --------------------------------
def _pick_tile(dim, align, max_tile):
    """Largest multiple of `align` that divides `dim` and is <= max_tile.

    Returns the full dimension when it already fits (a full-extent block is
    always legal).  Fails loudly instead of silently requesting a huge
    whole-dimension block (fatal on v7x's 64 MiB VMEM)."""
    if dim <= max_tile:
        return dim
    if dim % align == 0:
        t = (max_tile // align) * align
        while t >= align:
            if dim % t == 0:
                return t
            t -= align
    raise ValueError(
        f"_pick_tile: dim={dim} has no {align}-aligned divisor <= {max_tile}; "
        "pad the array or pick a different layout.")


def _halve_tile(dim, tile, align):
    """Largest aligned divisor of `dim` that is <= tile // 2, or None."""
    target = tile // 2
    if target < align:
        return None
    t = (target // align) * align
    while t >= align:
        if dim % t == 0:
            return t
        t -= align
    return None


# ================================= kernels ====================================
def _pool_rows_kernel(x_ref, o_ref):
    """K1 (row layout): spatial sum over the lane (hw) axis; resident accumulator."""
    @pl.when(pl.program_id(1) == 0)
    def _():
        o_ref[...] = jnp.zeros_like(o_ref)
    o_ref[...] += jnp.sum(x_ref[...].astype(jnp.float32), axis=1, keepdims=True)


def _pool_flat_kernel(x_ref, pmat_ref, o_ref):
    """K1 (lane-flattened layout): per-channel spatial mean via a 0/1-segment
    matmul — keeps loads 128-lane dense even when h*w % 128 != 0."""
    o_ref[...] = jnp.dot(x_ref[...].astype(jnp.float32), pmat_ref[...],
                         preferred_element_type=jnp.float32)


def _attn_kernel(pooled_ref, w1_ref, s1_ref, b1_ref, w2_ref, s2_ref, b2_ref,
                 w3_ref, attn_ref, *, T, scale):
    """K2: temporal (3,1,1) conv chain, ALL clips batched into one grid step.

    Each layer is three accumulated (rows, Cin) @ (Cin, Cout) MXU dots whose LHS
    is shifted along the sublane axis only (no lane-axis concatenation); clip
    boundaries are zeroed with an iota mask to reproduce the zero temporal
    padding of the reference Conv3d per clip."""
    p = pooled_ref[...].astype(jnp.float32) * scale          # (n*T, C) pooled means
    rows = p.shape[0]
    t_idx = jax.lax.broadcasted_iota(jnp.int32, (rows, 1), 0) % T

    def tconv(q, w_ref):
        cq = q.shape[1]
        z = jnp.zeros((1, cq), jnp.float32)
        prev = jnp.where(t_idx == 0, 0.0,
                         jnp.concatenate([z, q[:-1, :]], axis=0))     # q[t-1]
        nxt = jnp.where(t_idx == T - 1, 0.0,
                        jnp.concatenate([q[1:, :], z], axis=0))       # q[t+1]
        return (jnp.dot(prev, w_ref[0], preferred_element_type=jnp.float32)
                + jnp.dot(q, w_ref[1], preferred_element_type=jnp.float32)
                + jnp.dot(nxt, w_ref[2], preferred_element_type=jnp.float32))

    y1 = jnp.maximum(tconv(p, w1_ref) * s1_ref[...] + b1_ref[...], 0.0)
    y2 = jnp.maximum(tconv(y1, w2_ref) * s2_ref[...] + b2_ref[...], 0.0) + y1
    attn_ref[...] = jax.nn.sigmoid(tconv(y2, w3_ref)) - 0.5


def _gate_rows_kernel(x_ref, a_ref, o_ref):
    """K3 (row layout): out = x * attn, attn broadcast across the hw lanes."""
    o_ref[...] = (x_ref[...].astype(jnp.float32) * a_ref[...]).astype(o_ref.dtype)


def _gate_flat_kernel(x_ref, a_ref, emat_ref, o_ref):
    """K3 (lane-flattened layout): expand per-channel attention across each
    channel's hw lane segment with a 0/1 expansion matmul (MXU, no relayout),
    then gate.  Keeps the big store 128-lane dense for hw like 7*7 / 14*14."""
    ax = jnp.dot(a_ref[...], emat_ref[...], preferred_element_type=jnp.float32)
    o_ref[...] = (x_ref[...].astype(jnp.float32) * ax).astype(o_ref.dtype)


def _fused_kernel(x_ref, w1_ref, s1_ref, b1_ref, w2_ref, s2_ref, b2_ref,
                  w3_ref, o_ref, *, inv_hw):
    """Single-pass per-clip kernel (v5e/v6e): pool + conv chain + gate with x
    read from HBM exactly once."""
    xb = x_ref[0].astype(jnp.float32)                        # (T, c, hw)
    p = jnp.sum(xb, axis=-1) * inv_hw                        # (T, c) spatial mean

    def tconv(q, w_ref):
        cq = q.shape[1]
        z = jnp.zeros((1, cq), jnp.float32)
        prev = jnp.concatenate([z, q[:-1, :]], axis=0)
        nxt = jnp.concatenate([q[1:, :], z], axis=0)
        return (jnp.dot(prev, w_ref[0], preferred_element_type=jnp.float32)
                + jnp.dot(q, w_ref[1], preferred_element_type=jnp.float32)
                + jnp.dot(nxt, w_ref[2], preferred_element_type=jnp.float32))

    y1 = jnp.maximum(tconv(p, w1_ref) * s1_ref[...] + b1_ref[...], 0.0)
    y2 = jnp.maximum(tconv(y1, w2_ref) * s2_ref[...] + b2_ref[...], 0.0) + y1
    a = jax.nn.sigmoid(tconv(y2, w3_ref)) - 0.5              # (T, c)
    o_ref[0] = (xb * a[:, :, None]).astype(o_ref.dtype)


# ============================ K2 launcher (shared) ============================
def _attention_from_pooled(pooled, scale, params, T, budget):
    """Batched temporal conv chain on the tiny pooled (nt, c) signal."""
    nt, c = pooled.shape
    c1 = params["w1"].shape[-1]
    full = lambda shape: pl.BlockSpec(shape, lambda i: (0,) * len(shape))
    wbytes = sum(int(params[k].size)
                 for k in ("w1", "w2", "w3", "s1", "b1", "s2", "b2")) * 4
    need = 2 * (2 * nt * c * 4 + wbytes) + (2 << 20)
    return pl.pallas_call(
        functools.partial(_attn_kernel, T=T, scale=float(scale)),
        out_shape=jax.ShapeDtypeStruct((nt, c), jnp.float32),
        grid=(1,),
        in_specs=[full((nt, c)),
                  full((3, c, c1)), full((1, c1)), full((1, c1)),
                  full((3, c1, c1)), full((1, c1)), full((1, c1)),
                  full((3, c1, c))],
        out_specs=full((nt, c)),
        compiler_params=pltpu.CompilerParams(
            dimension_semantics=("arbitrary",),
            vmem_limit_bytes=int(min(max(need, 16 << 20), budget))),
    )(pooled, params["w1"], params["s1"], params["b1"],
      params["w2"], params["s2"], params["b2"], params["w3"])


# ================================= wrapper ====================================
def multi_scale_temporal_attention(x, params, *, num_segments, mode="auto",
                                   donate_x=False):
    """Forward pass of MultiScaleTemporalAttention (eval mode).

    x: (nt, c, h, w), nt = n * num_segments.  params: see make_params.
    mode: "auto" | "fused" | "flat" | "split".
    donate_x: alias x's HBM buffer for the gated output (only if x is dead)."""
    nt, c, h, w = x.shape
    T = int(num_segments)
    if nt % T:
        raise ValueError("nt must be a multiple of num_segments")
    n = nt // T
    hw = h * w
    c1 = params["w1"].shape[-1]
    out_dtype = x.dtype
    itemsize = jnp.dtype(x.dtype).itemsize
    row_align = 16 if itemsize == 2 else 8            # bf16 sublane packing

    budget = _vmem_budget_bytes()
    physical = _vmem_physical_bytes()
    w1, w2, w3 = params["w1"], params["w2"], params["w3"]
    s1, b1, s2, b2 = params["s1"], params["b1"], params["s2"], params["b2"]
    wbytes = (w1.size + w2.size + w3.size + s1.size + b1.size + s2.size
              + b2.size) * 4

    # ------------------------------ path selection ----------------------------
    slab = 2 * T * c * hw * itemsize                   # one clip, in + out
    lane_dense = (hw % 128 == 0)
    c_blk = 128
    e_bytes = c_blk * c_blk * hw * 4
    flat_ok = (not lane_dense) and (c % c_blk == 0) and (e_bytes <= (16 << 20))
    fused_need = 2 * slab + 2 * wbytes + (4 << 20)     # double-buffered
    if mode == "auto":
        if flat_ok:
            mode = "flat"        # lane density is the biggest measured lever
        elif fused_need <= budget and physical >= (100 << 20):
            mode = "fused"       # v5e/v6e: one HBM read of x instead of two
        else:
            mode = "split"       # v7x (64 MiB VMEM) or oversized clip slabs
    if mode not in ("fused", "flat", "split"):
        raise ValueError(f"unknown mode: {mode}")
    if mode == "flat" and c % c_blk != 0:
        raise ValueError("flat mode requires channels to be a multiple of 128")
    io_alias = {0: 0} if donate_x else {}

    # ------------------------- fused single-pass path -------------------------
    if mode == "fused":
        x4 = x.reshape(n, T, c, hw)
        full = lambda shape: pl.BlockSpec(shape, lambda i: (0,) * len(shape))
        out = pl.pallas_call(
            functools.partial(_fused_kernel, inv_hw=1.0 / float(hw)),
            out_shape=jax.ShapeDtypeStruct((n, T, c, hw), out_dtype),
            grid=(n,),
            in_specs=[pl.BlockSpec((1, T, c, hw), lambda i: (i, 0, 0, 0)),
                      full((3, c, c1)), full((1, c1)), full((1, c1)),
                      full((3, c1, c1)), full((1, c1)), full((1, c1)),
                      full((3, c1, c))],
            out_specs=pl.BlockSpec((1, T, c, hw), lambda i: (i, 0, 0, 0)),
            compiler_params=pltpu.CompilerParams(
                dimension_semantics=("parallel",),
                vmem_limit_bytes=int(min(max(fused_need, 16 << 20), budget))),
            input_output_aliases=io_alias,
        )(x4, w1, s1, b1, w2, s2, b2, w3)
        return out.reshape(nt, c, h, w)

    # ------------------ lane-flattened 3-pass path (hw % 128 != 0) ------------
    if mode == "flat":
        L = c_blk * hw                                  # 128-lane-dense block width
        xf = x.reshape(nt, c * hw)
        tn = _pick_tile(nt, row_align, max(row_align, (4 << 20) // (itemsize * L)))
        if (nt // tn) * (c // c_blk) < 2:               # feed both v7x TCs
            tn = _halve_tile(nt, tn, row_align) or tn
        # 0/1 segment matrices: pool each channel's hw lanes / expand attention.
        pool_mat = jnp.kron(jnp.eye(c_blk, dtype=jnp.float32),
                            jnp.full((hw, 1), 1.0 / hw, jnp.float32))
        expand_mat = jnp.kron(jnp.eye(c_blk, dtype=jnp.float32),
                              jnp.ones((1, hw), jnp.float32))

        k1_need = 2 * (tn * L * itemsize + L * c_blk * 4 + tn * c_blk * 4) + (2 << 20)
        pooled = pl.pallas_call(
            _pool_flat_kernel,
            out_shape=jax.ShapeDtypeStruct((nt, c), jnp.float32),
            grid=(nt // tn, c // c_blk),
            in_specs=[pl.BlockSpec((tn, L), lambda i, j: (i, j)),
                      pl.BlockSpec((L, c_blk), lambda i, j: (0, 0))],
            out_specs=pl.BlockSpec((tn, c_blk), lambda i, j: (i, j)),
            compiler_params=pltpu.CompilerParams(
                dimension_semantics=("parallel", "parallel"),
                vmem_limit_bytes=int(min(max(k1_need, 16 << 20), budget))),
        )(xf, pool_mat)

        attn = _attention_from_pooled(pooled, 1.0, params, T, budget)

        k3_need = 2 * (2 * tn * L * itemsize + c_blk * L * 4 + tn * c_blk * 4) + (2 << 20)
        out = pl.pallas_call(
            _gate_flat_kernel,
            out_shape=jax.ShapeDtypeStruct((nt, c * hw), out_dtype),
            grid=(nt // tn, c // c_blk),
            in_specs=[pl.BlockSpec((tn, L), lambda i, j: (i, j)),
                      pl.BlockSpec((tn, c_blk), lambda i, j: (i, j)),
                      pl.BlockSpec((c_blk, L), lambda i, j: (0, 0))],
            out_specs=pl.BlockSpec((tn, L), lambda i, j: (i, j)),
            compiler_params=pltpu.CompilerParams(
                dimension_semantics=("parallel", "parallel"),
                vmem_limit_bytes=int(min(max(k3_need, 16 << 20), budget))),
            input_output_aliases=io_alias,
        )(xf, attn, expand_mat)
        return out.reshape(nt, c, h, w)

    # ------------------------------ 3-pass split path -------------------------
    R = nt * c
    x2 = x.reshape(R, hw)                               # free reshape, lane dim = hw
    tc = _pick_tile(hw, 128, 4096)                      # ~4 MiB lane-dense blocks
    tr = _pick_tile(R, row_align, max(row_align, (4 << 20) // (itemsize * tc)))
    if R // tr < 2:                                     # feed both v7x TCs
        tr = _halve_tile(R, tr, row_align) or tr

    def k1_need(tr_):
        return 2 * (tr_ * tc * itemsize + tr_ * 4) + (2 << 20)

    def k3_need(tr_):
        return 2 * (2 * tr_ * tc * itemsize + tr_ * 4) + (2 << 20)

    while k3_need(tr) > budget:                         # fit scoped-VMEM budget
        smaller = _halve_tile(R, tr, row_align)
        if smaller is None:
            break
        tr = smaller

    pooled_sum = pl.pallas_call(
        _pool_rows_kernel,
        out_shape=jax.ShapeDtypeStruct((R, 1), jnp.float32),
        grid=(R // tr, hw // tc),                       # reduction axis last
        in_specs=[pl.BlockSpec((tr, tc), lambda i, j: (i, j))],
        out_specs=pl.BlockSpec((tr, 1), lambda i, j: (i, 0)),
        compiler_params=pltpu.CompilerParams(
            dimension_semantics=("parallel", "arbitrary"),
            vmem_limit_bytes=int(min(max(k1_need(tr), 16 << 20), budget))),
    )(x2)

    attn = _attention_from_pooled(pooled_sum.reshape(nt, c), 1.0 / float(hw),
                                  params, T, budget)

    out = pl.pallas_call(
        _gate_rows_kernel,
        out_shape=jax.ShapeDtypeStruct((R, hw), out_dtype),
        grid=(R // tr, hw // tc),
        in_specs=[pl.BlockSpec((tr, tc), lambda i, j: (i, j)),
                  pl.BlockSpec((tr, 1), lambda i, j: (i, 0))],
        out_specs=pl.BlockSpec((tr, tc), lambda i, j: (i, j)),
        compiler_params=pltpu.CompilerParams(
            dimension_semantics=("parallel", "parallel"),
            vmem_limit_bytes=int(min(max(k3_need(tr), 16 << 20), budget))),
        input_output_aliases=io_alias,
    )(x2, attn.reshape(R, 1))
    return out.reshape(nt, c, h, w)


# ----------------------------- pure-JAX reference -----------------------------
def _reference(x, params, *, num_segments):
    nt, c, h, w = x.shape
    n, T = nt // num_segments, num_segments
    xr = x.reshape(n, T, c, h * w)
    pooled = xr.mean(-1)                                   # (n, T, c)

    def tconv(p, wk):                                      # wk: (3, Cin, Cout)
        pp = jnp.pad(p, ((0, 0), (1, 1), (0, 0)))
        return pp[:, :-2] @ wk[0] + pp[:, 1:-1] @ wk[1] + pp[:, 2:] @ wk[2]

    y1 = jnp.maximum(tconv(pooled, params["w1"]) * params["s1"] + params["b1"], 0.0)
    y2 = jnp.maximum(tconv(y1, params["w2"]) * params["s2"] + params["b2"], 0.0) + y1
    attn = jax.nn.sigmoid(tconv(y2, params["w3"])) - 0.5
    return (xr * attn[..., None]).reshape(nt, c, h, w)


# ----------------------------- deterministic params ---------------------------
def make_params(key, planes, div):
    c1 = planes // div
    ks = jax.random.split(key, 12)
    eps = 1e-5

    def bn_fold(kg, kb, km, kv, ch):
        gamma = jax.random.uniform(kg, (1, ch), minval=0.5, maxval=1.5)
        beta = 0.1 * jax.random.normal(kb, (1, ch))
        mean = 0.1 * jax.random.normal(km, (1, ch))
        var = jax.random.uniform(kv, (1, ch), minval=0.5, maxval=1.5)
        scale = gamma / jnp.sqrt(var + eps)          # eval-mode BN folded
        shift = beta - mean * scale
        return scale.astype(jnp.float32), shift.astype(jnp.float32)

    # Conv3d weights stored as (tap=3, Cin, Cout)  ==  torch weight[o,i,k,0,0].T
    w1 = 0.3 * jax.random.normal(ks[0], (3, planes, c1), jnp.float32)
    w2 = 0.3 * jax.random.normal(ks[1], (3, c1, c1), jnp.float32)
    w3 = 0.3 * jax.random.normal(ks[2], (3, c1, planes), jnp.float32)
    s1, b1 = bn_fold(ks[3], ks[4], ks[5], ks[6], c1)
    s2, b2 = bn_fold(ks[7], ks[8], ks[9], ks[10], c1)
    # TODO(synk): training-mode BatchNorm (batch statistics) not modeled; eval-mode BN is folded.
    return dict(w1=w1, s1=s1, b1=b1, w2=w2, s2=s2, b2=b2, w3=w3)


if __name__ == "__main__":
    cases = [
        # (name, planes, div, T, n, h, w, mode, storage dtype, atol)
        ("split / hw%128==0        ", 16,  4, 8, 2, 16, 16, "split", jnp.float32,  1e-4),
        ("fused / single HBM pass  ", 16,  4, 8, 2, 16, 16, "fused", jnp.float32,  1e-4),
        ("flat  / lane-dense 7x7   ", 128, 4, 8, 2,  7,  7, "auto",  jnp.float32,  2e-2),
        ("split / masked fallback  ", 24,  4, 8, 2,  7,  7, "split", jnp.float32,  2e-3),
        ("split / bf16 storage     ", 16,  4, 8, 2, 16, 16, "split", jnp.bfloat16, 2e-2),
    ]

    key = jax.random.PRNGKey(0)
    for name, planes, div, T, n, h, w, mode, dtype, atol in cases:
        key, kx, kp = jax.random.split(key, 3)
        nt = n * T
        x = jax.random.normal(kx, (nt, planes, h, w), jnp.float32).astype(dtype)
        params = make_params(kp, planes, div)

        fn = jax.jit(functools.partial(multi_scale_temporal_attention,
                                       num_segments=T, mode=mode))
        out = fn(x, params)
        jax.block_until_ready(out)

        ref = _reference(x.astype(jnp.float32), params, num_segments=T)
        err = float(jnp.max(jnp.abs(out.astype(jnp.float32) - ref)))
        assert out.shape == (nt, planes, h, w), (name, out.shape)
        assert err <= atol, (name, err)

    print("KERNEL_OK")
</pallas_src>

<mosaic_0001>
module attributes {stable_mosaic.version = 11 : i64} {
  func.func @_pool_rows_kernel(%arg0: i32, %arg1: i32, %arg2: memref<128x256xf32, #tpu.memory_space<vmem>>, %arg3: memref<128x1xf32, #tpu.memory_space<vmem>>) attributes {dimension_semantics = [#tpu.dimension_semantics<parallel>, #tpu.dimension_semantics<arbitrary>], iteration_bounds = array<i64: 2, 1>, scalar_prefetch = 0 : i64, scratch_operands = 0 : i64, tpu.core_type = #tpu.core_type<tc>, window_params = [{transform_indices = @transform_0, window_bounds = array<i64: 128, 256>}, {transform_indices = @transform_1, window_bounds = array<i64: 128, 1>}]} {
    %c0_i32 = arith.constant 0 : i32
    %0 = arith.cmpi eq, %arg1, %c0_i32 : i32
    %1 = arith.extui %0 : i1 to i32
    %c0_i32_0 = arith.constant 0 : i32
    %2 = arith.cmpi ne, %1, %c0_i32_0 : i32
    scf.if %2 {
      %cst_6 = arith.constant 0.000000e+00 : f32
      %9 = vector.broadcast %cst_6 : f32 to vector<128x1xf32>
      %c0_7 = arith.constant 0 : index
      %c0_8 = arith.constant 0 : index
      %10 = vector.load %arg3[%c0_7, %c0_8] : memref<128x1xf32, #tpu.memory_space<vmem>>, vector<128x1xf32>
      tpu.vector_store %arg3[%c0_7, %c0_8], %9 {strides = array<i32>} : memref<128x1xf32, #tpu.memory_space<vmem>>, vector<128x1xf32>,
    } else {
    }
    %c0 = arith.constant 0 : index
    %c0_1 = arith.constant 0 : index
    %3 = vector.load %arg3[%c0, %c0_1] : memref<128x1xf32, #tpu.memory_space<vmem>>, vector<128x1xf32>
    %c0_2 = arith.constant 0 : index
    %c0_3 = arith.constant 0 : index
    %4 = vector.load %arg2[%c0_2, %c0_3] : memref<128x256xf32, #tpu.memory_space<vmem>>, vector<128x256xf32>
    %cst = arith.constant dense<0.000000e+00> : vector<128xf32>
    %5 = vector.multi_reduction <add>, %4, %cst [1] : vector<128x256xf32> to vector<128xf32>
    %6 = vector.shape_cast %5 : vector<128xf32> to vector<128x1xf32>
    %7 = arith.addf %3, %6 : vector<128x1xf32>
    %c0_4 = arith.constant 0 : index
    %c0_5 = arith.constant 0 : index
    %8 = vector.load %arg3[%c0_4, %c0_5] : memref<128x1xf32, #tpu.memory_space<vmem>>, vector<128x1xf32>
    tpu.vector_store %arg3[%c0_4, %c0_5], %7 {strides = array<i32>} : memref<128x1xf32, #tpu.memory_space<vmem>>, vector<128x1xf32>,
    return
  }
  func.func @transform_0(%arg0: i32, %arg1: i32) -> (i32, i32) {
    %c0_i32 = arith.constant 0 : i32
    return %arg0, %arg1 : i32, i32
  }
  func.func @transform_1(%arg0: i32, %arg1: i32) -> (i32, i32) {
    %c0_i32 = arith.constant 0 : i32
    %c0_i32_0 = arith.constant 0 : i32
    return %arg0, %c0_i32 : i32, i32
  }
}

module attributes {stable_mosaic.version = 11 : i64} {
  func.func @_attn_kernel(%arg0: i32, %arg1: memref<16x16xf32, #tpu.memory_space<vmem>>, %arg2: memref<3x16x4xf32, #tpu.memory_space<vmem>>, %arg3: memref<1x4xf32, #tpu.memory_space<vmem>>, %arg4: memref<1x4xf32, #tpu.memory_space<vmem>>, %arg5: memref<3x4x4xf32, #tpu.memory_space<vmem>>, %arg6: memref<1x4xf32, #tpu.memory_space<vmem>>, %arg7: memref<1x4xf32, #tpu.memory_space<vmem>>, %arg8: memref<3x4x16xf32, #tpu.memory_space<vmem>>, %arg9: memref<16x16xf32, #tpu.memory_space<vmem>>) attributes {dimension_semantics = [#tpu.dimension_semantics<arbitrary>], iteration_bounds = array<i64: 1>, scalar_prefetch = 0 : i64, scratch_operands = 0 : i64, tpu.core_type = #tpu.core_type<tc>, window_params = [{pipeline_mode = #tpu.pipeline_mode<synchronous>, transform_indices = @transform_0, window_bounds = array<i64: 16, 16>}, {pipeline_mode = #tpu.pipeline_mode<synchronous>, transform_indices = @transform_1, window_bounds = array<i64: 3, 16, 4>}, {pipeline_mode = #tpu.pipeline_mode<synchronous>, transform_indices = @transform_2, window_bounds = array<i64: 1, 4>}, {pipeline_mode = #tpu.pipeline_mode<synchronous>, transform_indices = @transform_3, window_bounds = array<i64: 1, 4>}, {pipeline_mode = #tpu.pipeline_mode<synchronous>, transform_indices = @transform_4, window_bounds = array<i64: 3, 4, 4>}, {pipeline_mode = #tpu.pipeline_mode<synchronous>, transform_indices = @transform_5, window_bounds = array<i64: 1, 4>}, {pipeline_mode = #tpu.pipeline_mode<synchronous>, transform_indices = @transform_6, window_bounds = array<i64: 1, 4>}, {pipeline_mode = #tpu.pipeline_mode<synchronous>, transform_indices = @transform_7, window_bounds = array<i64: 3, 4, 16>}, {pipeline_mode = #tpu.pipeline_mode<synchronous>, transform_indices = @transform_8, window_bounds = array<i64: 16, 16>}]} {
    %c0 = arith.constant 0 : index
    %c0_0 = arith.constant 0 : index
    %0 = vector.load %arg1[%c0, %c0_0] : memref<16x16xf32, #tpu.memory_space<vmem>>, vector<16x16xf32>
    %cst = arith.constant 3.906250e-03 : f32
    %1 = vector.broadcast %cst : f32 to vector<16x16xf32>
    %2 = arith.mulf %0, %1 : vector<16x16xf32>
    %3 = tpu.iota {dimensions = array<i32: 0>} : vector<16x1xi32>
    %c8_i32 = arith.constant 8 : i32
    %c0_i32 = arith.constant 0 : i32
    %4 = arith.cmpi eq, %c8_i32, %c0_i32 : i32
    %c1_i32 = arith.constant 1 : i32
    %5 = arith.select %4, %c1_i32, %c8_i32 : i32
    %6 = vector.broadcast %5 : i32 to vector<16x1xi32>
    %7 = arith.remsi %3, %6 : vector<16x1xi32>
    %c0_i32_1 = arith.constant 0 : i32
    %8 = vector.broadcast %c0_i32_1 : i32 to vector<16x1xi32>
    %9 = arith.cmpi ne, %7, %8 : vector<16x1xi32>
    %c0_i32_2 = arith.constant 0 : i32
    %10 = vector.broadcast %c0_i32_2 : i32 to vector<16x1xi32>
    %11 = arith.cmpi slt, %7, %10 : vector<16x1xi32>
    %c0_i32_3 = arith.constant 0 : i32
    %12 = arith.cmpi slt, %5, %c0_i32_3 : i32
    %13 = vector.broadcast %12 : i1 to vector<16x1xi1>
    %14 = vector.broadcast %13 : vector<16x1xi1> to vector<16x1xi1>
    %15 = arith.xori %11, %14 : vector<16x1xi1>
    %16 = arith.andi %15, %9 : vector<16x1xi1>
    %17 = vector.broadcast %5 : i32 to vector<16x1xi32>
    %18 = arith.addi %7, %17 : vector<16x1xi32>
    %19 = arith.select %16, %18, %7 : vector<16x1xi1>, vector<16x1xi32>
    %cst_4 = arith.constant 0.000000e+00 : f32
    %20 = vector.broadcast %cst_4 : f32 to vector<1x16xf32>
    %c0_i32_5 = arith.constant 0 : i32
    %21 = vector.broadcast %c0_i32_5 : i32 to vector<16x1xi32>
    %22 = arith.cmpi eq, %19, %21 : vector<16x1xi32>
    %23 = vector.extract_strided_slice %2 {offsets = [0, 0], sizes = [15, 16], strides = [1, 1]} : vector<16x16xf32> to vector<15x16xf32>
    %24 = tpu.concatenate %20, %23 in 0 : vector<1x16xf32>, vector<15x16xf32> -> vector<16x16xf32>
    %cst_6 = arith.constant 0.000000e+00 : f32
    %25 = vector.shape_cast %22 : vector<16x1xi1> to vector<16x1xi1>
    %26 = vector.broadcast %25 : vector<16x1xi1> to vector<16x16xi1>
    %27 = vector.broadcast %cst_6 : f32 to vector<16x16xf32>
    %28 = arith.select %26, %27, %24 : vector<16x16xi1>, vector<16x16xf32>
    %c7_i32 = arith.constant 7 : i32
    %29 = vector.broadcast %c7_i32 : i32 to vector<16x1xi32>
    %30 = arith.cmpi eq, %19, %29 : vector<16x1xi32>
    %31 = vector.extract_strided_slice %2 {offsets = [1, 0], sizes = [15, 16], strides = [1, 1]} : vector<16x16xf32> to vector<15x16xf32>
    %32 = tpu.concatenate %31, %20 in 0 : vector<15x16xf32>, vector<1x16xf32> -> vector<16x16xf32>
    %cst_7 = arith.constant 0.000000e+00 : f32
    %33 = vector.shape_cast %30 : vector<16x1xi1> to vector<16x1xi1>
    %34 = vector.broadcast %33 : vector<16x1xi1> to vector<16x16xi1>
    %35 = vector.broadcast %cst_7 : f32 to vector<16x16xf32>
    %36 = arith.select %34, %35, %32 : vector<16x16xi1>, vector<16x16xf32>
    %c0_8 = arith.constant 0 : index
    %c0_9 = arith.constant 0 : index
    %c0_10 = arith.constant 0 : index
    %37 = vector.load %arg2[%c0_8, %c0_9, %c0_10] : memref<3x16x4xf32, #tpu.memory_space<vmem>>, vector<1x16x4xf32>
    %38 = vector.shape_cast %37 : vector<1x16x4xf32> to vector<16x4xf32>
    %cst_11 = arith.constant dense<0.000000e+00> : vector<16x4xf32>
    %39 = tpu.matmul %28, %38, %cst_11 {dimension_numbers = #tpu.dot_dimension_numbers<[1], [0], [0], [1], [0, 0, 1, 1], [], []>} : vector<16x16xf32>, vector<16x4xf32>, vector<16x4xf32> -> vector<16x4xf32>
    %c1 = arith.constant 1 : index
    %c0_12 = arith.constant 0 : index
    %c0_13 = arith.constant 0 : index
    %40 = vector.load %arg2[%c1, %c0_12, %c0_13] : memref<3x16x4xf32, #tpu.memory_space<vmem>>, vector<1x16x4xf32>
    %41 = vector.shape_cast %40 : vector<1x16x4xf32> to vector<16x4xf32>
    %cst_14 = arith.constant dense<0.000000e+00> : vector<16x4xf32>
    %42 = tpu.matmul %2, %41, %cst_14 {dimension_numbers = #tpu.dot_dimension_numbers<[1], [0], [0], [1], [0, 0, 1, 1], [], []>} : vector<16x16xf32>, vector<16x4xf32>, vector<16x4xf32> -> vector<16x4xf32>
    %43 = arith.addf %39, %42 : vector<16x4xf32>
    %c2 = arith.constant 2 : index
    %c0_15 = arith.constant 0 : index
    %c0_16 = arith.constant 0 : index
    %44 = vector.load %arg2[%c2, %c0_15, %c0_16] : memref<3x16x4xf32, #tpu.memory_space<vmem>>, vector<1x16x4xf32>
    %45 = vector.shape_cast %44 : vector<1x16x4xf32> to vector<16x4xf32>
    %cst_17 = arith.constant dense<0.000000e+00> : vector<16x4xf32>
    %46 = tpu.matmul %36, %45, %cst_17 {dimension_numbers = #tpu.dot_dimension_numbers<[1], [0], [0], [1], [0, 0, 1, 1], [], []>} : vector<16x16xf32>, vector<16x4xf32>, vector<16x4xf32> -> vector<16x4xf32>
    %47 = arith.addf %43, %46 : vector<16x4xf32>
    %c0_18 = arith.constant 0 : index
    %c0_19 = arith.constant 0 : index
    %48 = vector.load %arg3[%c0_18, %c0_19] : memref<1x4xf32, #tpu.memory_space<vmem>>, vector<1x4xf32>
    %49 = vector.broadcast %48 : vector<1x4xf32> to vector<16x4xf32>
    %50 = arith.mulf %47, %49 : vector<16x4xf32>
    %c0_20 = arith.constant 0 : index
    %c0_21 = arith.constant 0 : index
    %51 = vector.load %arg4[%c0_20, %c0_21] : memref<1x4xf32, #tpu.memory_space<vmem>>, vector<1x4xf32>
    %52 = vector.broadcast %51 : vector<1x4xf32> to vector<16x4xf32>
    %53 = arith.addf %50, %52 : vector<16x4xf32>
    %cst_22 = arith.constant 0.000000e+00 : f32
    %54 = vector.broadcast %cst_22 : f32 to vector<16x4xf32>
    %55 = arith.maximumf %53, %54 : vector<16x4xf32>
    %cst_23 = arith.constant 0.000000e+00 : f32
    %56 = vector.broadcast %cst_23 : f32 to vector<1x4xf32>
    %c0_i32_24 = arith.constant 0 : i32
    %57 = vector.broadcast %c0_i32_24 : i32 to vector<16x1xi32>
    %58 = arith.cmpi eq, %19, %57 : vector<16x1xi32>
    %59 = vector.extract_strided_slice %55 {offsets = [0, 0], sizes = [15, 4], strides = [1, 1]} : vector<16x4xf32> to vector<15x4xf32>
    %60 = tpu.concatenate %56, %59 in 0 : vector<1x4xf32>, vector<15x4xf32> -> vector<16x4xf32>
    %cst_25 = arith.constant 0.000000e+00 : f32
    %61 = vector.shape_cast %58 : vector<16x1xi1> to vector<16x1xi1>
    %62 = vector.broadcast %61 : vector<16x1xi1> to vector<16x4xi1>
    %63 = vector.broadcast %cst_25 : f32 to vector<16x4xf32>
    %64 = arith.select %62, %63, %60 : vector<16x4xi1>, vector<16x4xf32>
    %c7_i32_26 = arith.constant 7 : i32
    %65 = vector.broadcast %c7_i32_26 : i32 to vector<16x1xi32>
    %66 = arith.cmpi eq, %19, %65 : vector<16x1xi32>
    %67 = vector.extract_strided_slice %55 {offsets = [1, 0], sizes = [15, 4], strides = [1, 1]} : vector<16x4xf32> to vector<15x4xf32>
    %68 = tpu.concatenate %67, %56 in 0 : vector<15x4xf32>, vector<1x4xf32> -> vector<16x4xf32>
    %cst_27 = arith.constant 0.000000e+00 : f32
    %69 = vector.shape_cast %66 : vector<16x1xi1> to vector<16x1xi1>
    %70 = vector.broadcast %69 : vector<16x1xi1> to vector<16x4xi1>
    %71 = vector.broadcast %cst_27 : f32 to vector<16x4xf32>
    %72 = arith.select %70, %71, %68 : vector<16x4xi1>, vector<16x4xf32>
    %c0_28 = arith.constant 0 : index
    %c0_29 = arith.constant 0 : index
    %c0_30 = arith.constant 0 : index
    %73 = vector.load %arg5[%c0_28, %c0_29, %c0_30] : memref<3x4x4xf32, #tpu.memory_space<vmem>>, vector<1x4x4xf32>
    %74 = vector.shape_cast %73 : vector<1x4x4xf32> to vector<4x4xf32>
    %cst_31 = arith.constant dense<0.000000e+00> : vector<16x4xf32>
    %75 = tpu.matmul %64, %74, %cst_31 {dimension_numbers = #tpu.dot_dimension_numbers<[1], [0], [0], [1], [0, 0, 1, 1], [], []>} : vector<16x4xf32>, vector<4x4xf32>, vector<16x4xf32> -> vector<16x4xf32>
    %c1_32 = arith.constant 1 : index
    %c0_33 = arith.constant 0 : index
    %c0_34 = arith.constant 0 : index
    %76 = vector.load %arg5[%c1_32, %c0_33, %c0_34] : memref<3x4x4xf32, #tpu.memory_space<vmem>>, vector<1x4x4xf32>
    %77 = vector.shape_cast %76 : vector<1x4x4xf32> to vector<4x4xf32>
    %cst_35 = arith.constant dense<0.000000e+00> : vector<16x4xf32>
    %78 = tpu.matmul %55, %77, %cst_35 {dimension_numbers = #tpu.dot_dimension_numbers<[1], [0], [0], [1], [0, 0, 1, 1], [], []>} : vector<16x4xf32>, vector<4x4xf32>, vector<16x4xf32> -> vector<16x4xf32>
    %79 = arith.addf %75, %78 : vector<16x4xf32>
    %c2_36 = arith.constant 2 : index
    %c0_37 = arith.constant 0 : index
    %c0_38 = arith.constant 0 : index
    %80 = vector.load %arg5[%c2_36, %c0_37, %c0_38] : memref<3x4x4xf32, #tpu.memory_space<vmem>>, vector<1x4x4xf32>
    %81 = vector.shape_cast %80 : vector<1x4x4xf32> to vector<4x4xf32>
    %cst_39 = arith.constant dense<0.000000e+00> : vector<16x4xf32>
    %82 = tpu.matmul %72, %81, %cst_39 {dimension_numbers = #tpu.dot_dimension_numbers<[1], [0], [0], [1], [0, 0, 1, 1], [], []>} : vector<16x4xf32>, vector<4x4xf32>, vector<16x4xf32> -> vector<16x4xf32>
    %83 = arith.addf %79, %82 : vector<16x4xf32>
    %c0_40 = arith.constant 0 : index
    %c0_41 = arith.constant 0 : index
    %84 = vector.load %arg6[%c0_40, %c0_41] : memref<1x4xf32, #tpu.memory_space<vmem>>, vector<1x4xf32>
    %85 = vector.broadcast %84 : vector<1x4xf32> to vector<16x4xf32>
    %86 = arith.mulf %83, %85 : vector<16x4xf32>
    %c0_42 = arith.constant 0 : index
    %c0_43 = arith.constant 0 : index
    %87 = vector.load %arg7[%c0_42, %c0_43] : memref<1x4xf32, #tpu.memory_space<vmem>>, vector<1x4xf32>
    %88 = vector.broadcast %87 : vector<1x4xf32> to vector<16x4xf32>
    %89 = arith.addf %86, %88 : vector<16x4xf32>
    %cst_44 = arith.constant 0.000000e+00 : f32
    %90 = vector.broadcast %cst_44 : f32 to vector<16x4xf32>
    %91 = arith.maximumf %89, %90 : vector<16x4xf32>
    %92 = arith.addf %91, %55 : vector<16x4xf32>
    %cst_45 = arith.constant 0.000000e+00 : f32
    %93 = vector.broadcast %cst_45 : f32 to vector<1x4xf32>
    %c0_i32_46 = arith.constant 0 : i32
    %94 = vector.broadcast %c0_i32_46 : i32 to vector<16x1xi32>
    %95 = arith.cmpi eq, %19, %94 : vector<16x1xi32>
    %96 = vector.extract_strided_slice %92 {offsets = [0, 0], sizes = [15, 4], strides = [1, 1]} : vector<16x4xf32> to vector<15x4xf32>
    %97 = tpu.concatenate %93, %96 in 0 : vector<1x4xf32>, vector<15x4xf32> -> vector<16x4xf32>
    %cst_47 = arith.constant 0.000000e+00 : f32
    %98 = vector.shape_cast %95 : vector<16x1xi1> to vector<16x1xi1>
    %99 = vector.broadcast %98 : vector<16x1xi1> to vector<16x4xi1>
    %100 = vector.broadcast %cst_47 : f32 to vector<16x4xf32>
    %101 = arith.select %99, %100, %97 : vector<16x4xi1>, vector<16x4xf32>
    %c7_i32_48 = arith.constant 7 : i32
    %102 = vector.broadcast %c7_i32_48 : i32 to vector<16x1xi32>
    %103 = arith.cmpi eq, %19, %102 : vector<16x1xi32>
    %104 = vector.extract_strided_slice %92 {offsets = [1, 0], sizes = [15, 4], strides = [1, 1]} : vector<16x4xf32> to vector<15x4xf32>
    %105 = tpu.concatenate %104, %93 in 0 : vector<15x4xf32>, vector<1x4xf32> -> vector<16x4xf32>
    %cst_49 = arith.constant 0.000000e+00 : f32
    %106 = vector.shape_cast %103 : vector<16x1xi1> to vector<16x1xi1>
    %107 = vector.broadcast %106 : vector<16x1xi1> to vector<16x4xi1>
    %108 = vector.broadcast %cst_49 : f32 to vector<16x4xf32>
    %109 = arith.select %107, %108, %105 : vector<16x4xi1>, vector<16x4xf32>
    %c0_50 = arith.constant 0 : index
    %c0_51 = arith.constant 0 : index
    %c0_52 = arith.constant 0 : index
    %110 = vector.load %arg8[%c0_50, %c0_51, %c0_52] : memref<3x4x16xf32, #tpu.memory_space<vmem>>, vector<1x4x16xf32>
    %111 = vector.shape_cast %110 : vector<1x4x16xf32> to vector<4x16xf32>
    %cst_53 = arith.constant dense<0.000000e+00> : vector<16x16xf32>
    %112 = tpu.matmul %101, %111, %cst_53 {dimension_numbers = #tpu.dot_dimension_numbers<[1], [0], [0], [1], [0, 0, 1, 1], [], []>} : vector<16x4xf32>, vector<4x16xf32>, vector<16x16xf32> -> vector<16x16xf32>
    %c1_54 = arith.constant 1 : index
    %c0_55 = arith.constant 0 : index
    %c0_56 = arith.constant 0 : index
    %113 = vector.load %arg8[%c1_54, %c0_55, %c0_56] : memref<3x4x16xf32, #tpu.memory_space<vmem>>, vector<1x4x16xf32>
    %114 = vector.shape_cast %113 : vector<1x4x16xf32> to vector<4x16xf32>
    %cst_57 = arith.constant dense<0.000000e+00> : vector<16x16xf32>
    %115 = tpu.matmul %92, %114, %cst_57 {dimension_numbers = #tpu.dot_dimension_numbers<[1], [0], [0], [1], [0, 0, 1, 1], [], []>} : vector<16x4xf32>, vector<4x16xf32>, vector<16x16xf32> -> vector<16x16xf32>
    %116 = arith.addf %112, %115 : vector<16x16xf32>
    %c2_58 = arith.constant 2 : index
    %c0_59 = arith.constant 0 : index
    %c0_60 = arith.constant 0 : index
    %117 = vector.load %arg8[%c2_58, %c0_59, %c0_60] : memref<3x4x16xf32, #tpu.memory_space<vmem>>, vector<1x4x16xf32>
    %118 = vector.shape_cast %117 : vector<1x4x16xf32> to vector<4x16xf32>
    %cst_61 = arith.constant dense<0.000000e+00> : vector<16x16xf32>
    %119 = tpu.matmul %109, %118, %cst_61 {dimension_numbers = #tpu.dot_dimension_numbers<[1], [0], [0], [1], [0, 0, 1, 1], [], []>} : vector<16x4xf32>, vector<4x16xf32>, vector<16x16xf32> -> vector<16x16xf32>
    %120 = arith.addf %116, %119 : vector<16x16xf32>
    %121 = arith.negf %120 : vector<16x16xf32>
    %122 = math.exp %121 : vector<16x16xf32>
    %cst_62 = arith.constant 1.000000e+00 : f32
    %123 = vector.broadcast %cst_62 : f32 to vector<16x16xf32>
    %124 = arith.addf %123, %122 : vector<16x16xf32>
    %125 = arith.divf %123, %124 : vector<16x16xf32>
    %cst_63 = arith.constant 5.000000e-01 : f32
    %126 = vector.broadcast %cst_63 : f32 to vector<16x16xf32>
    %127 = arith.subf %125, %126 : vector<16x16xf32>
    %c0_64 = arith.constant 0 : index
    %c0_65 = arith.constant 0 : index
    %128 = vector.load %arg9[%c0_64, %c0_65] : memref<16x16xf32, #tpu.memory_space<vmem>>, vector<16x16xf32>
    tpu.vector_store %arg9[%c0_64, %c0_65], %127 {strides = array<i32>} : memref<16x16xf32, #tpu.memory_space<vmem>>, vector<16x16xf32>,
    return
  }
  func.func @transform_0(%arg0: i32) -> (i32, i32) {
    %c0_i32 = arith.constant 0 : i32
    %c0_i32_0 = arith.constant 0 : i32
    %c0_i32_1 = arith.constant 0 : i32
    return %c0_i32, %c0_i32_0 : i32, i32
  }
  func.func @transform_1(%arg0: i32) -> (i32, i32, i32) {
    %c0_i32 = arith.constant 0 : i32
    %c0_i32_0 = arith.constant 0 : i32
    %c0_i32_1 = arith.constant 0 : i32
    %c0_i32_2 = arith.constant 0 : i32
    return %c0_i32, %c0_i32_0, %c0_i32_1 : i32, i32, i32
  }
  func.func @transform_2(%arg0: i32) -> (i32, i32) {
    %c0_i32 = arith.constant 0 : i32
    %c0_i32_0 = arith.constant 0 : i32
    %c0_i32_1 = arith.constant 0 : i32
    return %c0_i32, %c0_i32_0 : i32, i32
  }
  func.func @transform_3(%arg0: i32) -> (i32, i32) {
    %c0_i32 = arith.constant 0 : i32
    %c0_i32_0 = arith.constant 0 : i32
    %c0_i32_1 = arith.constant 0 : i32
    return %c0_i32, %c0_i32_0 : i32, i32
  }
  func.func @transform_4(%arg0: i32) -> (i32, i32, i32) {
    %c0_i32 = arith.constant 0 : i32
    %c0_i32_0 = arith.constant 0 : i32
    %c0_i32_1 = arith.constant 0 : i32
    %c0_i32_2 = arith.constant 0 : i32
    return %c0_i32, %c0_i32_0, %c0_i32_1 : i32, i32, i32
  }
  func.func @transform_5(%arg0: i32) -> (i32, i32) {
    %c0_i32 = arith.constant 0 : i32
    %c0_i32_0 = arith.constant 0 : i32
    %c0_i32_1 = arith.constant 0 : i32
    return %c0_i32, %c0_i32_0 : i32, i32
  }
  func.func @transform_6(%arg0: i32) -> (i32, i32) {
    %c0_i32 = arith.constant 0 : i32
    %c0_i32_0 = arith.constant 0 : i32
    %c0_i32_1 = arith.constant 0 : i32
    return %c0_i32, %c0_i32_0 : i32, i32
  }
  func.func @transform_7(%arg0: i32) -> (i32, i32, i32) {
    %c0_i32 = arith.constant 0 : i32
    %c0_i32_0 = arith.constant 0 : i32
    %c0_i32_1 = arith.constant 0 : i32
    %c0_i32_2 = arith.constant 0 : i32
    return %c0_i32, %c0_i32_0, %c0_i32_1 : i32, i32, i32
  }
  func.func @transform_8(%arg0: i32) -> (i32, i32) {
    %c0_i32 = arith.constant 0 : i32
    %c0_i32_0 = arith.constant 0 : i32
    %c0_i32_1 = arith.constant 0 : i32
    return %c0_i32, %c0_i32_0 : i32, i32
  }
}

module attributes {stable_mosaic.version = 11 : i64} {
  func.func @_gate_rows_kernel(%arg0: i32, %arg1: i32, %arg2: memref<128x256xf32, #tpu.memory_space<vmem>>, %arg3: memref<128x1xf32, #tpu.memory_space<vmem>>, %arg4: memref<128x256xf32, #tpu.memory_space<vmem>>) attributes {dimension_semantics = [#tpu.dimension_semantics<parallel>, #tpu.dimension_semantics<parallel>], iteration_bounds = array<i64: 2, 1>, scalar_prefetch = 0 : i64, scratch_operands = 0 : i64, tpu.core_type = #tpu.core_type<tc>, window_params = [{transform_indices = @transform_0, window_bounds = array<i64: 128, 256>}, {transform_indices = @transform_1, window_bounds = array<i64: 128, 1>}, {transform_indices = @transform_2, window_bounds = array<i64: 128, 256>}]} {
    %c0 = arith.constant 0 : index
    %c0_0 = arith.constant 0 : index
    %0 = vector.load %arg2[%c0, %c0_0] : memref<128x256xf32, #tpu.memory_space<vmem>>, vector<128x256xf32>
    %c0_1 = arith.constant 0 : index
    %c0_2 = arith.constant 0 : index
    %1 = vector.load %arg3[%c0_1, %c0_2] : memref<128x1xf32, #tpu.memory_space<vmem>>, vector<128x1xf32>
    %2 = vector.broadcast %1 : vector<128x1xf32> to vector<128x256xf32>
    %3 = arith.mulf %0, %2 : vector<128x256xf32>
    %c0_3 = arith.constant 0 : index
    %c0_4 = arith.constant 0 : index
    %4 = vector.load %arg4[%c0_3, %c0_4] : memref<128x256xf32, #tpu.memory_space<vmem>>, vector<128x256xf32>
    tpu.vector_store %arg4[%c0_3, %c0_4], %3 {strides = array<i32>} : memref<128x256xf32, #tpu.memory_space<vmem>>, vector<128x256xf32>,
    return
  }
  func.func @transform_0(%arg0: i32, %arg1: i32) -> (i32, i32) {
    %c0_i32 = arith.constant 0 : i32
    return %arg0, %arg1 : i32, i32
  }
  func.func @transform_1(%arg0: i32, %arg1: i32) -> (i32, i32) {
    %c0_i32 = arith.constant 0 : i32
    %c0_i32_0 = arith.constant 0 : i32
    return %arg0, %c0_i32 : i32, i32
  }
  func.func @transform_2(%arg0: i32, %arg1: i32) -> (i32, i32) {
    %c0_i32 = arith.constant 0 : i32
    return %arg0, %arg1 : i32, i32
  }
}

</mosaic_0001>

<llo_original>
// kernel: multi_scale_temporal_attention.3
$region0: #{multi_scale_temporal_attention.3}
  #allocation0 [shape = 'u32[]', space=smem, size = 0x4, offset = 0x4, fixed_abs, tag = 'smem constant byte address 0x4 - core index']
  #allocation1 [shape = 'u32[144,128]{1,0:T(1,128)}', space=vmem, size = 0x12000, scoped, tag = 'internal scratch']
  %s0 = inlined_call_operand.vmem [shape: f32[256,256], index: 0, kind: input, shape index: {}]
  %s1 = inlined_call_operand.vmem [shape: f32[256,1], index: 1, kind: output, shape index: {}]
  %s2 = sld [smem:[#allocation0]]
  $region41: #{multi_scale_temporal_attention.3} parent=0
    _
  %s4 = ssub.s32 1, %s2
  %s5 = scalar_select 0, %s4, %s2
  loop: start=0, step=1, limit=4
  $region2: #{multi_scale_temporal_attention.3} parent=0 // loop_pre_header
    _
  $region3: #{multi_scale_temporal_attention.3} parent=0 // loop_header
    %s7 = sphi 0, %s11
    %p8 = scmp.ge.s32.totalorder %s7, 4
    %s14 = sphi 0, %s26
    %s15 = sphi 0, %s22
    %s16 = sphi 0, %s14
    %s17 = sphi 0, %s15
    %s18 = sphi 0, %s16
    %s19 = sphi 0, %s17
    %s31 = sphi 0, %s33
    %s34 = sphi 0, %s31
    %s35 = sphi 0, %s34
    %s51 = sphi 0, %s35
    %s57 = sphi 0, %s59
    %s60 = sphi 0, %s57
    %s61 = sphi 0, %s60
    %s77 = sphi 0, %s61
  $region4: #{multi_scale_temporal_attention.3} parent=0 // loop_header_branch
    %10 = sbr.rel (%p8) target = $region8
  $region5: #{multi_scale_temporal_attention.3} parent=0 // loop_body
    %s12 = ssub.s32 %s7, 1
    %s13 = ssub.s32 %s7, 2
    %s20 = sadd.s32 1, %s15
    %p21 = scmp.ge.s32.totalorder %s20, 1
    %s22 = scalar_select %p21, 0, %s20
    %s23 = sadd.s32 1, %s14
    %s24 = scalar_select %p21, %s23, %s14
    %p25 = scmp.ge.s32.totalorder %s24, 2
    %s26 = scalar_select %p25, 0, %s24
    %s27 = ssub.s32 %s14, %s26
    %s28 = ssub.s32 %s15, %s22
    %s29 = sor.u32 %s27, %s28
    %p30 = scmp.eq.s32.totalorder %s29, 0
    %s32 = sadd.s32 %s31, 1
    %s33 = scalar_select %p30, %s31, %s32
    %p36 = pneg %p30
    %p37 = scmp.eq.s32.totalorder %s7, 1
    %p38 = por %p36, %p37
    %p39 = scmp.ne.s32.totalorder %s31, %s34
    %p40 = scmp.eq.s32.totalorder %s7, 0
    %p41 = por %p39, %p40
    %p42 = scmp.ne.s32.totalorder %s31, %s34
    %p43 = scmp.eq.s32.totalorder %s12, 1
    %p44 = por %p42, %p43
    %p45 = scmp.ne.s32.totalorder %s34, %s35
    %p46 = scmp.eq.s32.totalorder %s12, 0
    %p47 = por %p45, %p46
    %p48 = scmp.ne.s32.totalorder %s34, %s35
    %p49 = scmp.eq.s32.totalorder %s13, 1
    %p50 = por %p48, %p49
    %p52 = scmp.ne.s32.totalorder %s35, %s51
    %p53 = scmp.eq.s32.totalorder %s13, 0
    %p54 = por %p52, %p53
    %s55 = ssub.s32 %s14, %s26
    %p56 = scmp.eq.s32.totalorder %s55, 0
    %s58 = sadd.s32 %s57, 1
    %s59 = scalar_select %p56, %s57, %s58
    %p62 = pneg %p56
    %p63 = scmp.eq.s32.totalorder %s7, 1
    %p64 = por %p62, %p63
    %p65 = scmp.ne.s32.totalorder %s57, %s60
    %p66 = scmp.eq.s32.totalorder %s7, 0
    %p67 = por %p65, %p66
    %p68 = scmp.ne.s32.totalorder %s57, %s60
    %p69 = scmp.eq.s32.totalorder %s12, 1
    %p70 = por %p68, %p69
    %p71 = scmp.ne.s32.totalorder %s60, %s61
    %p72 = scmp.eq.s32.totalorder %s12, 0
    %p73 = por %p71, %p72
    %p74 = scmp.ne.s32.totalorder %s60, %s61
    %p75 = scmp.eq.s32.totalorder %s13, 1
    %p76 = por %p74, %p75
    %p78 = scmp.ne.s32.totalorder %s61, %s77
    %p79 = scmp.eq.s32.totalorder %s13, 0
    %p80 = por %p78, %p79
    %p81 = scmp.le.s32.totalorder 1, %s7
    %p82 = scmp.lt.s32.totalorder %s7, 3
    %p83 = pnand %p81, %p82
    %p84 = pneg %p83
    // Predicated region
    $region9: #{multi_scale_temporal_attention.3} parent=5 // pred_check
      _
    $region10: #{multi_scale_temporal_attention.3} parent=5 // pred_check_branch
      %86 = sbr.rel (%p83) target = $region12
    $region11: #{multi_scale_temporal_attention.3} parent=5 // pred_region
      %s87 = ssub.s32 %s7, 1
    $region12: #{multi_scale_temporal_attention.3} parent=5 // pred_fallthru
      _
    %p88 = scmp.lt.s32.totalorder %s7, 2
    // Predicated region
    $region13: #{multi_scale_temporal_attention.3} parent=5 // pred_check
      %p89 = pneg %p88
    $region14: #{multi_scale_temporal_attention.3} parent=5 // pred_check_branch
      %91 = sbr.rel (%p89) target = $region16
    $region15: #{multi_scale_temporal_attention.3} parent=5 // pred_region
      // Predicated region
      $region17: #{multi_scale_temporal_attention.3} parent=15 // pred_check
        %p92 = pneg %p41
      $region18: #{multi_scale_temporal_attention.3} parent=15 // pred_check_branch
        %94 = sbr.rel (%p92) target = $region20
      $region19: #{multi_scale_temporal_attention.3} parent=15 // pred_region
        %s95 = smul.u32 16, %s14
        %s96 = smul.u32 2, %s15
        %p97 = scmp.lt.s32.totalorder %s95, 31
        %s98 = scalar_select %p97, %s95, 31
        %p99 = scmp.lt.s32.totalorder %s96, 1
        %s100 = scalar_select %p99, %s96, 1
        %s101 = smul.addr %s98, 2
        %s102 = sadd.s32 %s100, %s101
        %s103 = smul.addr %s102, 8
        %s104 = scalar_lea.vmem %s0, %s103
        %s105 = smul.u32 16, %s14
        %s106 = smul.u32 2, %s15
      $region20: #{multi_scale_temporal_attention.3} parent=15 // pred_fallthru
        _
    $region16: #{multi_scale_temporal_attention.3} parent=5 // pred_fallthru
      _
    %p107 = scmp.le.s32.totalorder 1, %s7
    %p108 = scmp.lt.s32.totalorder %s7, 3
    %p109 = pnand %p107, %p108
    %p110 = pneg %p109
    // Predicated region
    $region21: #{multi_scale_temporal_attention.3} parent=5 // pred_check
      _
    $region22: #{multi_scale_temporal_attention.3} parent=5 // pred_check_branch
      %112 = sbr.rel (%p109) target = $region24
    $region23: #{multi_scale_temporal_attention.3} parent=5 // pred_region
      %s113 = ssub.s32 %s7, 1
      %s114 = smul.u32 16, %s16
      %s115 = smul.u32 2, %s17
      %p116 = scmp.lt.s32.totalorder %s114, 31
      %s117 = scalar_select %p116, %s114, 31
      %p118 = scmp.lt.s32.totalorder %s115, 1
      %s119 = scalar_select %p118, %s115, 1
      %s120 = smul.addr %s117, 2
      %s121 = sadd.s32 %s119, %s120
      %s122 = smul.addr %s121, 8
      %s123 = scalar_lea.vmem %s0, %s122
      %p124 = pneg %p47
      %p125 = pneg %p44
      %p126 = pneg %p73
      %p127 = pneg %p70
      %s128 = smul.u32 16, %s16
      %p129 = scmp.lt.s32.totalorder %s128, 31
      %s130 = scalar_select %p129, %s128, 31
      %s131 = smul.addr %s130, 8
      %s132 = scalar_lea.vmem %s1, %s131
      %s133 = smul.u32 16, %s16
      %s134 = smul.u32 2, %s17
      %p135 = scmp.lt.s32.totalorder %s133, 31
      %s136 = scalar_select %p135, %s133, 31
      %p137 = scmp.lt.s32.totalorder %s134, 1
      %s138 = scalar_select %p137, %s134, 1
      %s139 = smul.addr %s136, 2
      %s140 = sadd.s32 %s138, %s139
      %s141 = smul.addr %s140, 8
      %s142 = scalar_lea.vmem %s0, %s141
      %s143 = smul.u32 16, %s16
      %s144 = smul.u32 2, %s17
      %s145 = smul.u32 16, %s16
      %p146 = scmp.lt.s32.totalorder %s145, 31
      %s147 = scalar_select %p146, %s145, 31
      %s148 = smul.addr %s147, 8
      %s149 = scalar_lea.vmem %s1, %s148
      %s150 = smul.u32 16, %s16
      %p151 = scmp.eq.s32.totalorder %s17, 0
      // Predicated region
      $region25: #{multi_scale_temporal_attention.3} parent=23 // pred_check
        %p152 = pneg %p151
      $region26: #{multi_scale_temporal_attention.3} parent=23 // pred_check_branch
        %154 = sbr.rel (%p152) target = $region28
      $region27: #{multi_scale_temporal_attention.3} parent=23 // pred_region
        %vm155 = vcmask 7168
        %156 = vst.msk [vmem:[%s149] sm:$0xff] %vm155, 0.0
        %157 = vst.msk [vmem:[%s149 + $0x8] sm:$0xff] %vm155, 0.0
        %158 = vst.msk [vmem:[%s149 + $0x10] sm:$0xff] %vm155, 0.0
        %159 = vst.msk [vmem:[%s149 + $0x18] sm:$0xff] %vm155, 0.0
        %160 = vst.msk [vmem:[%s149 + $0x20] sm:$0xff] %vm155, 0.0
        %161 = vst.msk [vmem:[%s149 + $0x28] sm:$0xff] %vm155, 0.0
        %162 = vst.msk [vmem:[%s149 + $0x30] sm:$0xff] %vm155, 0.0
        %163 = vst.msk [vmem:[%s149 + $0x38] sm:$0xff] %vm155, 0.0
        %164 = vst.msk [vmem:[%s149 + $0x40] sm:$0xff] %vm155, 0.0
        %165 = vst.msk [vmem:[%s149 + $0x48] sm:$0xff] %vm155, 0.0
        %166 = vst.msk [vmem:[%s149 + $0x50] sm:$0xff] %vm155, 0.0
        %167 = vst.msk [vmem:[%s149 + $0x58] sm:$0xff] %vm155, 0.0
        %168 = vst.msk [vmem:[%s149 + $0x60] sm:$0xff] %vm155, 0.0
        %169 = vst.msk [vmem:[%s149 + $0x68] sm:$0xff] %vm155, 0.0
        %170 = vst.msk [vmem:[%s149 + $0x70] sm:$0xff] %vm155, 0.0
        %171 = vst.msk [vmem:[%s149 + $0x78] sm:$0xff] %vm155, 0.0
      $region28: #{multi_scale_temporal_attention.3} parent=23 // pred_fallthru
        _
      %v172 = vld [vmem:[%s149] sm:$0xff]
      %v173 = vld [vmem:[%s149 + $0x8] sm:$0xff]
      %v174 = vld [vmem:[%s149 + $0x10] sm:$0xff]
      %v175 = vld [vmem:[%s149 + $0x18] sm:$0xff]
      %v176 = vld [vmem:[%s149 + $0x20] sm:$0xff]
      %v177 = vld [vmem:[%s149 + $0x28] sm:$0xff]
      %v178 = vld [vmem:[%s149 + $0x30] sm:$0xff]
      %v179 = vld [vmem:[%s149 + $0x38] sm:$0xff]
      %v180 = vld [vmem:[%s149 + $0x40] sm:$0xff]
      %v181 = vld [vmem:[%s149 + $0x48] sm:$0xff]
      %v182 = vld [vmem:[%s149 + $0x50] sm:$0xff]
      %v183 = vld [vmem:[%s149 + $0x58] sm:$0xff]
      %v184 = vld [vmem:[%s149 + $0x60] sm:$0xff]
      %v185 = vld [vmem:[%s149 + $0x68] sm:$0xff]
      %v186 = vld [vmem:[%s149 + $0x70] sm:$0xff]
      %v187 = vld [vmem:[%s149 + $0x78] sm:$0xff]
      %v188 = vld [vmem:[%s142] sm:$0xff]
      %v189 = vld [vmem:[%s142 + $0x8] sm:$0xff]
      %v190 = vld [vmem:[%s142 + $0x10] sm:$0xff]
      %v191 = vld [vmem:[%s142 + $0x18] sm:$0xff]
      %v192 = vld [vmem:[%s142 + $0x20] sm:$0xff]
      %v193 = vld [vmem:[%s142 + $0x28] sm:$0xff]
      %v194 = vld [vmem:[%s142 + $0x30] sm:$0xff]
      %v195 = vld [vmem:[%s142 + $0x38] sm:$0xff]
      %v196 = vld [vmem:[%s142 + $0x40] sm:$0xff]
      %v197 = vld [vmem:[%s142 + $0x48] sm:$0xff]
      %v198 = vld [vmem:[%s142 + $0x50] sm:$0xff]
      %v199 = vld [vmem:[%s142 + $0x58] sm:$0xff]
      %v200 = vld [vmem:[%s142 + $0x60] sm:$0xff]
      %v201 = vld [vmem:[%s142 + $0x68] sm:$0xff]
      %v202 = vld [vmem:[%s142 + $0x70] sm:$0xff]
      %v203 = vld [vmem:[%s142 + $0x78] sm:$0xff]
      %v204 = vld [vmem:[%s142 + $0x80] sm:$0xff]
      %v205 = vld [vmem:[%s142 + $0x88] sm:$0xff]
      %v206 = vld [vmem:[%s142 + $0x90] sm:$0xff]
      %v207 = vld [vmem:[%s142 + $0x98] sm:$0xff]
      %v208 = vld [vmem:[%s142 + $0xa0] sm:$0xff]
      %v209 = vld [vmem:[%s142 + $0xa8] sm:$0xff]
      %v210 = vld [vmem:[%s142 + $0xb0] sm:$0xff]
      %v211 = vld [vmem:[%s142 + $0xb8] sm:$0xff]
      %v212 = vld [vmem:[%s142 + $0xc0] sm:$0xff]
      %v213 = vld [vmem:[%s142 + $0xc8] sm:$0xff]
      %v214 = vld [vmem:[%s142 + $0xd0] sm:$0xff]
      %v215 = vld [vmem:[%s142 + $0xd8] sm:$0xff]
      %v216 = vld [vmem:[%s142 + $0xe0] sm:$0xff]
      %v217 = vld [vmem:[%s142 + $0xe8] sm:$0xff]
      %v218 = vld [vmem:[%s142 + $0xf0] sm:$0xff]
      %v219 = vld [vmem:[%s142 + $0xf8] sm:$0xff]
      %v220 = vadd.f32 %v188, %v189
      %221 = vadd.xlane.f32.xlu0 %v220
      %v222 = vpop.xlane.xlu0 %221
      %v223 = vadd.f32 %v190, %v191
      %224 = vadd.xlane.f32.xlu0 %v223
      %v225 = vpop.xlane.xlu0 %224
      %v226 = vadd.f32 %v192, %v193
      %227 = vadd.xlane.f32.xlu0 %v226
      %v228 = vpop.xlane.xlu0 %227
      %v229 = vadd.f32 %v194, %v195
      %230 = vadd.xlane.f32.xlu0 %v229
      %v231 = vpop.xlane.xlu0 %230
      %v232 = vadd.f32 %v196, %v197
      %233 = vadd.xlane.f32.xlu0 %v232
      %v234 = vpop.xlane.xlu0 %233
      %v235 = vadd.f32 %v198, %v199
      %236 = vadd.xlane.f32.xlu0 %v235
      %v237 = vpop.xlane.xlu0 %236
      %v238 = vadd.f32 %v200, %v201
      %239 = vadd.xlane.f32.xlu0 %v238
      %v240 = vpop.xlane.xlu0 %239
      %v241 = vadd.f32 %v202, %v203
      %242 = vadd.xlane.f32.xlu0 %v241
      %v243 = vpop.xlane.xlu0 %242
      %v244 = vadd.f32 %v204, %v205
      %245 = vadd.xlane.f32.xlu0 %v244
      %v246 = vpop.xlane.xlu0 %245
      %v247 = vadd.f32 %v206, %v207
      %248 = vadd.xlane.f32.xlu0 %v247
      %v249 = vpop.xlane.xlu0 %248
      %v250 = vadd.f32 %v208, %v209
      %251 = vadd.xlane.f32.xlu0 %v250
      %v252 = vpop.xlane.xlu0 %251
      %v253 = vadd.f32 %v210, %v211
      %254 = vadd.xlane.f32.xlu0 %v253
      %v255 = vpop.xlane.xlu0 %254
      %v256 = vadd.f32 %v212, %v213
      %257 = vadd.xlane.f32.xlu0 %v256
      %v258 = vpop.xlane.xlu0 %257
      %v259 = vadd.f32 %v214, %v215
      %260 = vadd.xlane.f32.xlu0 %v259
      %v261 = vpop.xlane.xlu0 %260
      %v262 = vadd.f32 %v216, %v217
      %263 = vadd.xlane.f32.xlu0 %v262
      %v264 = vpop.xlane.xlu0 %263
      %v265 = vadd.f32 %v218, %v219
      %266 = vadd.xlane.f32.xlu0 %v265
      %v267 = vpop.xlane.xlu0 %266
      %v268 = vadd.f32 %v172, %v222
      %v269 = vadd.f32 %v173, %v225
      %v270 = vadd.f32 %v174, %v228
      %v271 = vadd.f32 %v175, %v231
      %v272 = vadd.f32 %v176, %v234
      %v273 = vadd.f32 %v177, %v237
      %v274 = vadd.f32 %v178, %v240
      %v275 = vadd.f32 %v179, %v243
      %v276 = vadd.f32 %v180, %v246
      %v277 = vadd.f32 %v181, %v249
      %v278 = vadd.f32 %v182, %v252
      %v279 = vadd.f32 %v183, %v255
      %v280 = vadd.f32 %v184, %v258
      %v281 = vadd.f32 %v185, %v261
      %v282 = vadd.f32 %v186, %v264
      %v283 = vadd.f32 %v187, %v267
      %vm284 = vcmask 7168
      %285 = vst.msk [vmem:[%s149] sm:$0xff] %vm284, %v268
      %286 = vst.msk [vmem:[%s149 + $0x8] sm:$0xff] %vm284, %v269
      %287 = vst.msk [vmem:[%s149 + $0x10] sm:$0xff] %vm284, %v270
      %288 = vst.msk [vmem:[%s149 + $0x18] sm:$0xff] %vm284, %v271
      %289 = vst.msk [vmem:[%s149 + $0x20] sm:$0xff] %vm284, %v272
      %290 = vst.msk [vmem:[%s149 + $0x28] sm:$0xff] %vm284, %v273
      %291 = vst.msk [vmem:[%s149 + $0x30] sm:$0xff] %vm284, %v274
      %292 = vst.msk [vmem:[%s149 + $0x38] sm:$0xff] %vm284, %v275
      %293 = vst.msk [vmem:[%s149 + $0x40] sm:$0xff] %vm284, %v276
      %294 = vst.msk [vmem:[%s149 + $0x48] sm:$0xff] %vm284, %v277
      %295 = vst.msk [vmem:[%s149 + $0x50] sm:$0xff] %vm284, %v278
      %296 = vst.msk [vmem:[%s149 + $0x58] sm:$0xff] %vm284, %v279
      %297 = vst.msk [vmem:[%s149 + $0x60] sm:$0xff] %vm284, %v280
      %298 = vst.msk [vmem:[%s149 + $0x68] sm:$0xff] %vm284, %v281
      %299 = vst.msk [vmem:[%s149 + $0x70] sm:$0xff] %vm284, %v282
      %300 = vst.msk [vmem:[%s149 + $0x78] sm:$0xff] %vm284, %v283
      %s301 = smul.u32 16, %s16
      %p302 = scmp.lt.s32.totalorder %s301, 31
      %s303 = scalar_select %p302, %s301, 31
      %s304 = smul.addr %s303, 8
      %s305 = scalar_lea.vmem %s1, %s304
      // Predicated region
      $region29: #{multi_scale_temporal_attention.3} parent=23 // pred_check
        %p306 = pneg %p70
      $region30: #{multi_scale_temporal_attention.3} parent=23 // pred_check_branch
        %308 = sbr.rel (%p306) target = $region32
      $region31: #{multi_scale_temporal_attention.3} parent=23 // pred_region
        %s309 = smul.u32 16, %s16
      $region32: #{multi_scale_temporal_attention.3} parent=23 // pred_fallthru
        _
    $region24: #{multi_scale_temporal_attention.3} parent=5 // pred_fallthru
      _
    %p310 = scmp.le.s32.totalorder 2, %s7
    // Predicated region
    $region33: #{multi_scale_temporal_attention.3} parent=5 // pred_check
      %p311 = pneg %p310
    $region34: #{multi_scale_temporal_attention.3} parent=5 // pred_check_branch
      %313 = sbr.rel (%p311) target = $region36
    $region35: #{multi_scale_temporal_attention.3} parent=5 // pred_region
      %s314 = ssub.s32 %s7, 2
      // Predicated region
      $region37: #{multi_scale_temporal_attention.3} parent=35 // pred_check
        %p315 = pneg %p76
      $region38: #{multi_scale_temporal_attention.3} parent=35 // pred_check_branch
        %317 = sbr.rel (%p315) target = $region40
      $region39: #{multi_scale_temporal_attention.3} parent=35 // pred_region
        %s318 = smul.u32 16, %s18
        %p319 = scmp.lt.s32.totalorder %s318, 31
        %s320 = scalar_select %p319, %s318, 31
        %s321 = smul.addr %s320, 8
        %s322 = scalar_lea.vmem %s1, %s321
      $region40: #{multi_scale_temporal_attention.3} parent=35 // pred_fallthru
        _
    $region36: #{multi_scale_temporal_attention.3} parent=5 // pred_fallthru
      _
  $region6: #{multi_scale_temporal_attention.3} parent=0 // loop_footer
    %s11 = sadd.s32 1, %s7
  $region7: #{multi_scale_temporal_attention.3} parent=0 // loop_footer_branch
    %6 = sbr.rel target = $region3
  $region8: #{multi_scale_temporal_attention.3} parent=0 // loop_exit
    _

// kernel: multi_scale_temporal_attention.5
$region0: #{multi_scale_temporal_attention.5}
  #allocation0 [shape = 'u32[]', space=smem, size = 0x4, offset = 0x4, fixed_abs, tag = 'smem constant byte address 0x4 - core index']
  #allocation1 [shape = 'u32[144,128]{1,0:T(1,128)}', space=vmem, size = 0x12000, scoped, tag = 'internal scratch']
  %s0 = inlined_call_operand.vmem [shape: f32[256,256], index: 0, kind: input, shape index: {}]
  %s1 = inlined_call_operand.vmem [shape: f32[256,1], index: 1, kind: input, shape index: {}]
  %s2 = inlined_call_operand.vmem [shape: f32[256,256], index: 2, kind: output, shape index: {}]
  %s3 = sld [smem:[#allocation0]]
  $region41: #{multi_scale_temporal_attention.5} parent=0
    _
  %s5 = ssub.s32 1, %s3
  %s6 = scalar_select 0, %s5, %s3
  loop: start=0, step=1, limit=4
  $region2: #{multi_scale_temporal_attention.5} parent=0 // loop_pre_header
    _
  $region3: #{multi_scale_temporal_attention.5} parent=0 // loop_header
    %s8 = sphi 0, %s12
    %p9 = scmp.ge.s32.totalorder %s8, 4
    %s15 = sphi 0, %s27
    %s16 = sphi 0, %s23
    %s17 = sphi 0, %s15
    %s18 = sphi 0, %s16
    %s19 = sphi 0, %s17
    %s20 = sphi 0, %s18
    %s32 = sphi 0, %s34
    %s35 = sphi 0, %s32
    %s36 = sphi 0, %s35
    %s52 = sphi 0, %s36
    %s58 = sphi 0, %s60
    %s61 = sphi 0, %s58
    %s62 = sphi 0, %s61
    %s78 = sphi 0, %s62
    %s86 = sphi 0, %s88
    %s89 = sphi 0, %s86
    %s90 = sphi 0, %s89
    %s106 = sphi 0, %s90
  $region4: #{multi_scale_temporal_attention.5} parent=0 // loop_header_branch
    %11 = sbr.rel (%p9) target = $region8
  $region5: #{multi_scale_temporal_attention.5} parent=0 // loop_body
    %s13 = ssub.s32 %s8, 1
    %s14 = ssub.s32 %s8, 2
    %s21 = sadd.s32 1, %s16
    %p22 = scmp.ge.s32.totalorder %s21, 1
    %s23 = scalar_select %p22, 0, %s21
    %s24 = sadd.s32 1, %s15
    %s25 = scalar_select %p22, %s24, %s15
    %p26 = scmp.ge.s32.totalorder %s25, 2
    %s27 = scalar_select %p26, 0, %s25
    %s28 = ssub.s32 %s15, %s27
    %s29 = ssub.s32 %s16, %s23
    %s30 = sor.u32 %s28, %s29
    %p31 = scmp.eq.s32.totalorder %s30, 0
    %s33 = sadd.s32 %s32, 1
    %s34 = scalar_select %p31, %s32, %s33
    %p37 = pneg %p31
    %p38 = scmp.eq.s32.totalorder %s8, 1
    %p39 = por %p37, %p38
    %p40 = scmp.ne.s32.totalorder %s32, %s35
    %p41 = scmp.eq.s32.totalorder %s8, 0
    %p42 = por %p40, %p41
    %p43 = scmp.ne.s32.totalorder %s32, %s35
    %p44 = scmp.eq.s32.totalorder %s13, 1
    %p45 = por %p43, %p44
    %p46 = scmp.ne.s32.totalorder %s35, %s36
    %p47 = scmp.eq.s32.totalorder %s13, 0
    %p48 = por %p46, %p47
    %p49 = scmp.ne.s32.totalorder %s35, %s36
    %p50 = scmp.eq.s32.totalorder %s14, 1
    %p51 = por %p49, %p50
    %p53 = scmp.ne.s32.totalorder %s36, %s52
    %p54 = scmp.eq.s32.totalorder %s14, 0
    %p55 = por %p53, %p54
    %s56 = ssub.s32 %s15, %s27
    %p57 = scmp.eq.s32.totalorder %s56, 0
    %s59 = sadd.s32 %s58, 1
    %s60 = scalar_select %p57, %s58, %s59
    %p63 = pneg %p57
    %p64 = scmp.eq.s32.totalorder %s8, 1
    %p65 = por %p63, %p64
    %p66 = scmp.ne.s32.totalorder %s58, %s61
    %p67 = scmp.eq.s32.totalorder %s8, 0
    %p68 = por %p66, %p67
    %p69 = scmp.ne.s32.totalorder %s58, %s61
    %p70 = scmp.eq.s32.totalorder %s13, 1
    %p71 = por %p69, %p70
    %p72 = scmp.ne.s32.totalorder %s61, %s62
    %p73 = scmp.eq.s32.totalorder %s13, 0
    %p74 = por %p72, %p73
    %p75 = scmp.ne.s32.totalorder %s61, %s62
    %p76 = scmp.eq.s32.totalorder %s14, 1
    %p77 = por %p75, %p76
    %p79 = scmp.ne.s32.totalorder %s62, %s78
    %p80 = scmp.eq.s32.totalorder %s14, 0
    %p81 = por %p79, %p80
    %s82 = ssub.s32 %s15, %s27
    %s83 = ssub.s32 %s16, %s23
    %s84 = sor.u32 %s82, %s83
    %p85 = scmp.eq.s32.totalorder %s84, 0
    %s87 = sadd.s32 %s86, 1
    %s88 = scalar_select %p85, %s86, %s87
    %p91 = pneg %p85
    %p92 = scmp.eq.s32.totalorder %s8, 1
    %p93 = por %p91, %p92
    %p94 = scmp.ne.s32.totalorder %s86, %s89
    %p95 = scmp.eq.s32.totalorder %s8, 0
    %p96 = por %p94, %p95
    %p97 = scmp.ne.s32.totalorder %s86, %s89
    %p98 = scmp.eq.s32.totalorder %s13, 1
    %p99 = por %p97, %p98
    %p100 = scmp.ne.s32.totalorder %s89, %s90
    %p101 = scmp.eq.s32.totalorder %s13, 0
    %p102 = por %p100, %p101
    %p103 = scmp.ne.s32.totalorder %s89, %s90
    %p104 = scmp.eq.s32.totalorder %s14, 1
    %p105 = por %p103, %p104
    %p107 = scmp.ne.s32.totalorder %s90, %s106
    %p108 = scmp.eq.s32.totalorder %s14, 0
    %p109 = por %p107, %p108
    %p110 = scmp.le.s32.totalorder 1, %s8
    %p111 = scmp.lt.s32.totalorder %s8, 3
    %p112 = pnand %p110, %p111
    %p113 = pneg %p112
    // Predicated region
    $region9: #{multi_scale_temporal_attention.5} parent=5 // pred_check
      _
    $region10: #{multi_scale_temporal_attention.5} parent=5 // pred_check_branch
      %115 = sbr.rel (%p112) target = $region12
    $region11: #{multi_scale_temporal_attention.5} parent=5 // pred_region
      %s116 = ssub.s32 %s8, 1
    $region12: #{multi_scale_temporal_attention.5} parent=5 // pred_fallthru
      _
    %p117 = scmp.lt.s32.totalorder %s8, 2
    // Predicated region
    $region13: #{multi_scale_temporal_attention.5} parent=5 // pred_check
      %p118 = pneg %p117
    $region14: #{multi_scale_temporal_attention.5} parent=5 // pred_check_branch
      %120 = sbr.rel (%p118) target = $region16
    $region15: #{multi_scale_temporal_attention.5} parent=5 // pred_region
      // Predicated region
      $region17: #{multi_scale_temporal_attention.5} parent=15 // pred_check
        %p121 = pneg %p42
      $region18: #{multi_scale_temporal_attention.5} parent=15 // pred_check_branch
        %123 = sbr.rel (%p121) target = $region20
      $region19: #{multi_scale_temporal_attention.5} parent=15 // pred_region
        %s124 = smul.u32 16, %s15
        %s125 = smul.u32 2, %s16
        %p126 = scmp.lt.s32.totalorder %s124, 31
        %s127 = scalar_select %p126, %s124, 31
        %p128 = scmp.lt.s32.totalorder %s125, 1
        %s129 = scalar_select %p128, %s125, 1
        %s130 = smul.addr %s127, 2
        %s131 = sadd.s32 %s129, %s130
        %s132 = smul.addr %s131, 8
        %s133 = scalar_lea.vmem %s0, %s132
        %s134 = smul.u32 16, %s15
        %s135 = smul.u32 2, %s16
      $region20: #{multi_scale_temporal_attention.5} parent=15 // pred_fallthru
        _
      // Predicated region
      $region21: #{multi_scale_temporal_attention.5} parent=15 // pred_check
        %p136 = pneg %p68
      $region22: #{multi_scale_temporal_attention.5} parent=15 // pred_check_branch
        %138 = sbr.rel (%p136) target = $region24
      $region23: #{multi_scale_temporal_attention.5} parent=15 // pred_region
        %s139 = smul.u32 16, %s15
        %p140 = scmp.lt.s32.totalorder %s139, 31
        %s141 = scalar_select %p140, %s139, 31
        %s142 = smul.addr %s141, 8
        %s143 = scalar_lea.vmem %s1, %s142
        %s144 = smul.u32 16, %s15
      $region24: #{multi_scale_temporal_attention.5} parent=15 // pred_fallthru
        _
    $region16: #{multi_scale_temporal_attention.5} parent=5 // pred_fallthru
      _
    %p145 = scmp.le.s32.totalorder 1, %s8
    %p146 = scmp.lt.s32.totalorder %s8, 3
    %p147 = pnand %p145, %p146
    %p148 = pneg %p147
    // Predicated region
    $region25: #{multi_scale_temporal_attention.5} parent=5 // pred_check
      _
    $region26: #{multi_scale_temporal_attention.5} parent=5 // pred_check_branch
      %150 = sbr.rel (%p147) target = $region28
    $region27: #{multi_scale_temporal_attention.5} parent=5 // pred_region
      %s151 = ssub.s32 %s8, 1
      %s152 = smul.u32 16, %s17
      %s153 = smul.u32 2, %s18
      %p154 = scmp.lt.s32.totalorder %s152, 31
      %s155 = scalar_select %p154, %s152, 31
      %p156 = scmp.lt.s32.totalorder %s153, 1
      %s157 = scalar_select %p156, %s153, 1
      %s158 = smul.addr %s155, 2
      %s159 = sadd.s32 %s157, %s158
      %s160 = smul.addr %s159, 8
      %s161 = scalar_lea.vmem %s0, %s160
      %p162 = pneg %p48
      %p163 = pneg %p45
      %s164 = smul.u32 16, %s17
      %p165 = scmp.lt.s32.totalorder %s164, 31
      %s166 = scalar_select %p165, %s164, 31
      %s167 = smul.addr %s166, 8
      %s168 = scalar_lea.vmem %s1, %s167
      %p169 = pneg %p74
      %p170 = pneg %p71
      %p171 = pneg %p102
      %p172 = pneg %p99
      %s173 = smul.u32 16, %s17
      %s174 = smul.u32 2, %s18
      %p175 = scmp.lt.s32.totalorder %s173, 31
      %s176 = scalar_select %p175, %s173, 31
      %p177 = scmp.lt.s32.totalorder %s174, 1
      %s178 = scalar_select %p177, %s174, 1
      %s179 = smul.addr %s176, 2
      %s180 = sadd.s32 %s178, %s179
      %s181 = smul.addr %s180, 8
      %s182 = scalar_lea.vmem %s2, %s181
      %s183 = smul.u32 16, %s17
      %s184 = smul.u32 2, %s18
      %p185 = scmp.lt.s32.totalorder %s183, 31
      %s186 = scalar_select %p185, %s183, 31
      %p187 = scmp.lt.s32.totalorder %s184, 1
      %s188 = scalar_select %p187, %s184, 1
      %s189 = smul.addr %s186, 2
      %s190 = sadd.s32 %s188, %s189
      %s191 = smul.addr %s190, 8
      %s192 = scalar_lea.vmem %s0, %s191
      %s193 = smul.u32 16, %s17
      %s194 = smul.u32 2, %s18
      %s195 = smul.u32 16, %s17
      %p196 = scmp.lt.s32.totalorder %s195, 31
      %s197 = scalar_select %p196, %s195, 31
      %s198 = smul.addr %s197, 8
      %s199 = scalar_lea.vmem %s1, %s198
      %s200 = smul.u32 16, %s17
      %s201 = smul.u32 16, %s17
      %s202 = smul.u32 2, %s18
      %p203 = scmp.lt.s32.totalorder %s201, 31
      %s204 = scalar_select %p203, %s201, 31
      %p205 = scmp.lt.s32.totalorder %s202, 1
      %s206 = scalar_select %p205, %s202, 1
      %s207 = smul.addr %s204, 2
      %s208 = sadd.s32 %s206, %s207
      %s209 = smul.addr %s208, 8
      %s210 = scalar_lea.vmem %s2, %s209
      %s211 = smul.u32 16, %s17
      %s212 = smul.u32 2, %s18
      %v213 = vld [vmem:[%s192] sm:$0xff]
      %v214 = vld [vmem:[%s192 + $0x8] sm:$0xff]
      %v215 = vld [vmem:[%s192 + $0x10] sm:$0xff]
      %v216 = vld [vmem:[%s192 + $0x18] sm:$0xff]
      %v217 = vld [vmem:[%s192 + $0x20] sm:$0xff]
      %v218 = vld [vmem:[%s192 + $0x28] sm:$0xff]
      %v219 = vld [vmem:[%s192 + $0x30] sm:$0xff]
      %v220 = vld [vmem:[%s192 + $0x38] sm:$0xff]
      %v221 = vld [vmem:[%s192 + $0x40] sm:$0xff]
      %v222 = vld [vmem:[%s192 + $0x48] sm:$0xff]
      %v223 = vld [vmem:[%s192 + $0x50] sm:$0xff]
      %v224 = vld [vmem:[%s192 + $0x58] sm:$0xff]
      %v225 = vld [vmem:[%s192 + $0x60] sm:$0xff]
      %v226 = vld [vmem:[%s192 + $0x68] sm:$0xff]
      %v227 = vld [vmem:[%s192 + $0x70] sm:$0xff]
      %v228 = vld [vmem:[%s192 + $0x78] sm:$0xff]
      %v229 = vld [vmem:[%s192 + $0x80] sm:$0xff]
      %v230 = vld [vmem:[%s192 + $0x88] sm:$0xff]
      %v231 = vld [vmem:[%s192 + $0x90] sm:$0xff]
      %v232 = vld [vmem:[%s192 + $0x98] sm:$0xff]
      %v233 = vld [vmem:[%s192 + $0xa0] sm:$0xff]
      %v234 = vld [vmem:[%s192 + $0xa8] sm:$0xff]
      %v235 = vld [vmem:[%s192 + $0xb0] sm:$0xff]
      %v236 = vld [vmem:[%s192 + $0xb8] sm:$0xff]
      %v237 = vld [vmem:[%s192 + $0xc0] sm:$0xff]
      %v238 = vld [vmem:[%s192 + $0xc8] sm:$0xff]
      %v239 = vld [vmem:[%s192 + $0xd0] sm:$0xff]
      %v240 = vld [vmem:[%s192 + $0xd8] sm:$0xff]
      %v241 = vld [vmem:[%s192 + $0xe0] sm:$0xff]
      %v242 = vld [vmem:[%s192 + $0xe8] sm:$0xff]
      %v243 = vld [vmem:[%s192 + $0xf0] sm:$0xff]
      %v244 = vld [vmem:[%s192 + $0xf8] sm:$0xff]
      %v245 = vld [vmem:[%s199] sm:$0xff]
      %v246 = vld [vmem:[%s199 + $0x8] sm:$0xff]
      %v247 = vld [vmem:[%s199 + $0x10] sm:$0xff]
      %v248 = vld [vmem:[%s199 + $0x18] sm:$0xff]
      %v249 = vld [vmem:[%s199 + $0x20] sm:$0xff]
      %v250 = vld [vmem:[%s199 + $0x28] sm:$0xff]
      %v251 = vld [vmem:[%s199 + $0x30] sm:$0xff]
      %v252 = vld [vmem:[%s199 + $0x38] sm:$0xff]
      %v253 = vld [vmem:[%s199 + $0x40] sm:$0xff]
      %v254 = vld [vmem:[%s199 + $0x48] sm:$0xff]
      %v255 = vld [vmem:[%s199 + $0x50] sm:$0xff]
      %v256 = vld [vmem:[%s199 + $0x58] sm:$0xff]
      %v257 = vld [vmem:[%s199 + $0x60] sm:$0xff]
      %v258 = vld [vmem:[%s199 + $0x68] sm:$0xff]
      %v259 = vld [vmem:[%s199 + $0x70] sm:$0xff]
      %v260 = vld [vmem:[%s199 + $0x78] sm:$0xff]
      %262 = vset.pattern.permute.xlu0 0
      %263 = vperm.xlu0 %262, %v245
      %v264 = vpop.permute.xlu0 %263
      %267 = vset.pattern.permute.xlu0 0
      %268 = vperm.xlu0 %267, %v246
      %v269 = vpop.permute.xlu0 %268
      %272 = vset.pattern.permute.xlu0 0
      %273 = vperm.xlu0 %272, %v247
      %v274 = vpop.permute.xlu0 %273
      %277 = vset.pattern.permute.xlu0 0
      %278 = vperm.xlu0 %277, %v248
      %v279 = vpop.permute.xlu0 %278
      %282 = vset.pattern.permute.xlu0 0
      %283 = vperm.xlu0 %282, %v249
      %v284 = vpop.permute.xlu0 %283
      %287 = vset.pattern.permute.xlu0 0
      %288 = vperm.xlu0 %287, %v250
      %v289 = vpop.permute.xlu0 %288
      %292 = vset.pattern.permute.xlu0 0
      %293 = vperm.xlu0 %292, %v251
      %v294 = vpop.permute.xlu0 %293
      %297 = vset.pattern.permute.xlu0 0
      %298 = vperm.xlu0 %297, %v252
      %v299 = vpop.permute.xlu0 %298
      %302 = vset.pattern.permute.xlu0 0
      %303 = vperm.xlu0 %302, %v253
      %v304 = vpop.permute.xlu0 %303
      %307 = vset.pattern.permute.xlu0 0
      %308 = vperm.xlu0 %307, %v254
      %v309 = vpop.permute.xlu0 %308
      %312 = vset.pattern.permute.xlu0 0
      %313 = vperm.xlu0 %312, %v255
      %v314 = vpop.permute.xlu0 %313
      %317 = vset.pattern.permute.xlu0 0
      %318 = vperm.xlu0 %317, %v256
      %v319 = vpop.permute.xlu0 %318
      %322 = vset.pattern.permute.xlu0 0
      %323 = vperm.xlu0 %322, %v257
      %v324 = vpop.permute.xlu0 %323
      %327 = vset.pattern.permute.xlu0 0
      %328 = vperm.xlu0 %327, %v258
      %v329 = vpop.permute.xlu0 %328
      %332 = vset.pattern.permute.xlu0 0
      %333 = vperm.xlu0 %332, %v259
      %v334 = vpop.permute.xlu0 %333
      %337 = vset.pattern.permute.xlu0 0
      %338 = vperm.xlu0 %337, %v260
      %v339 = vpop.permute.xlu0 %338
      %v341 = vmul.f32 %v213, %v264
      %v342 = vmul.f32 %v214, %v264
      %v343 = vmul.f32 %v215, %v269
      %v344 = vmul.f32 %v216, %v269
      %v345 = vmul.f32 %v217, %v274
      %v346 = vmul.f32 %v218, %v274
      %v347 = vmul.f32 %v219, %v279
      %v348 = vmul.f32 %v220, %v279
      %v349 = vmul.f32 %v221, %v284
      %v350 = vmul.f32 %v222, %v284
      %v351 = vmul.f32 %v223, %v289
      %v352 = vmul.f32 %v224, %v289
      %v353 = vmul.f32 %v225, %v294
      %v354 = vmul.f32 %v226, %v294
      %v355 = vmul.f32 %v227, %v299
      %v356 = vmul.f32 %v228, %v299
      %v357 = vmul.f32 %v229, %v304
      %v358 = vmul.f32 %v230, %v304
      %v359 = vmul.f32 %v231, %v309
      %v360 = vmul.f32 %v232, %v309
      %v361 = vmul.f32 %v233, %v314
      %v362 = vmul.f32 %v234, %v314
      %v363 = vmul.f32 %v235, %v319
      %v364 = vmul.f32 %v236, %v319
      %v365 = vmul.f32 %v237, %v324
      %v366 = vmul.f32 %v238, %v324
      %v367 = vmul.f32 %v239, %v329
      %v368 = vmul.f32 %v240, %v329
      %v369 = vmul.f32 %v241, %v334
      %v370 = vmul.f32 %v242, %v334
      %v371 = vmul.f32 %v243, %v339
      %v372 = vmul.f32 %v244, %v339
      %373 = vst [vmem:[%s210] sm:$0xff] %v341
      %374 = vst [vmem:[%s210 + $0x8] sm:$0xff] %v342
      %375 = vst [vmem:[%s210 + $0x10] sm:$0xff] %v343
      %376 = vst [vmem:[%s210 + $0x18] sm:$0xff] %v344
      %377 = vst [vmem:[%s210 + $0x20] sm:$0xff] %v345
      %378 = vst [vmem:[%s210 + $0x28] sm:$0xff] %v346
      %379 = vst [vmem:[%s210 + $0x30] sm:$0xff] %v347
      %380 = vst [vmem:[%s210 + $0x38] sm:$0xff] %v348
      %381 = vst [vmem:[%s210 + $0x40] sm:$0xff] %v349
      %382 = vst [vmem:[%s210 + $0x48] sm:$0xff] %v350
      %383 = vst [vmem:[%s210 + $0x50] sm:$0xff] %v351
      %384 = vst [vmem:[%s210 + $0x58] sm:$0xff] %v352
      %385 = vst [vmem:[%s210 + $0x60] sm:$0xff] %v353
      %386 = vst [vmem:[%s210 + $0x68] sm:$0xff] %v354
      %387 = vst [vmem:[%s210 + $0x70] sm:$0xff] %v355
      %388 = vst [vmem:[%s210 + $0x78] sm:$0xff] %v356
      %389 = vst [vmem:[%s210 + $0x80] sm:$0xff] %v357
      %390 = vst [vmem:[%s210 + $0x88] sm:$0xff] %v358
      %391 = vst [vmem:[%s210 + $0x90] sm:$0xff] %v359
      %392 = vst [vmem:[%s210 + $0x98] sm:$0xff] %v360
      %393 = vst [vmem:[%s210 + $0xa0] sm:$0xff] %v361
      %394 = vst [vmem:[%s210 + $0xa8] sm:$0xff] %v362
      %395 = vst [vmem:[%s210 + $0xb0] sm:$0xff] %v363
      %396 = vst [vmem:[%s210 + $0xb8] sm:$0xff] %v364
      %397 = vst [vmem:[%s210 + $0xc0] sm:$0xff] %v365
      %398 = vst [vmem:[%s210 + $0xc8] sm:$0xff] %v366
      %399 = vst [vmem:[%s210 + $0xd0] sm:$0xff] %v367
      %400 = vst [vmem:[%s210 + $0xd8] sm:$0xff] %v368
      %401 = vst [vmem:[%s210 + $0xe0] sm:$0xff] %v369
      %402 = vst [vmem:[%s210 + $0xe8] sm:$0xff] %v370
      %403 = vst [vmem:[%s210 + $0xf0] sm:$0xff] %v371
      %404 = vst [vmem:[%s210 + $0xf8] sm:$0xff] %v372
      %s405 = smul.u32 16, %s17
      %s406 = smul.u32 2, %s18
      %p407 = scmp.lt.s32.totalorder %s405, 31
      %s408 = scalar_select %p407, %s405, 31
      %p409 = scmp.lt.s32.totalorder %s406, 1
      %s410 = scalar_select %p409, %s406, 1
      %s411 = smul.addr %s408, 2
      %s412 = sadd.s32 %s410, %s411
      %s413 = smul.addr %s412, 8
      %s414 = scalar_lea.vmem %s2, %s413
      // Predicated region
      $region29: #{multi_scale_temporal_attention.5} parent=27 // pred_check
        %p415 = pneg %p99
      $region30: #{multi_scale_temporal_attention.5} parent=27 // pred_check_branch
        %417 = sbr.rel (%p415) target = $region32
      $region31: #{multi_scale_temporal_attention.5} parent=27 // pred_region
        %s418 = smul.u32 16, %s17
        %s419 = smul.u32 2, %s18
      $region32: #{multi_scale_temporal_attention.5} parent=27 // pred_fallthru
        _
    $region28: #{multi_scale_temporal_attention.5} parent=5 // pred_fallthru
      _
    %p420 = scmp.le.s32.totalorder 2, %s8
    // Predicated region
    $region33: #{multi_scale_temporal_attention.5} parent=5 // pred_check
      %p421 = pneg %p420
    $region34: #{multi_scale_temporal_attention.5} parent=5 // pred_check_branch
      %423 = sbr.rel (%p421) target = $region36
    $region35: #{multi_scale_temporal_attention.5} parent=5 // pred_region
      %s424 = ssub.s32 %s8, 2
      // Predicated region
      $region37: #{multi_scale_temporal_attention.5} parent=35 // pred_check
        %p425 = pneg %p105
      $region38: #{multi_scale_temporal_attention.5} parent=35 // pred_check_branch
        %427 = sbr.rel (%p425) target = $region40
      $region39: #{multi_scale_temporal_attention.5} parent=35 // pred_region
        %s428 = smul.u32 16, %s19
        %s429 = smul.u32 2, %s20
        %p430 = scmp.lt.s32.totalorder %s428, 31
        %s431 = scalar_select %p430, %s428, 31
        %p432 = scmp.lt.s32.totalorder %s429, 1
        %s433 = scalar_select %p432, %s429, 1
        %s434 = smul.addr %s431, 2
        %s435 = sadd.s32 %s433, %s434
        %s436 = smul.addr %s435, 8
        %s437 = scalar_lea.vmem %s2, %s436
      $region40: #{multi_scale_temporal_attention.5} parent=35 // pred_fallthru
        _
    $region36: #{multi_scale_temporal_attention.5} parent=5 // pred_fallthru
      _
  $region6: #{multi_scale_temporal_attention.5} parent=0 // loop_footer
    %s12 = sadd.s32 1, %s8
  $region7: #{multi_scale_temporal_attention.5} parent=0 // loop_footer_branch
    %7 = sbr.rel target = $region3
  $region8: #{multi_scale_temporal_attention.5} parent=0 // loop_exit
    _

// kernel: multi_scale_temporal_attention.4
$region0: #{multi_scale_temporal_attention.4}
  #allocation0 [shape = 'u32[]', space=smem, size = 0x4, offset = 0x4, fixed_abs, tag = 'smem constant byte address 0x4 - core index']
  #allocation1 [shape = 'u32[144,128]{1,0:T(1,128)}', space=vmem, size = 0x12000, scoped, tag = 'internal scratch']
  %s0 = inlined_call_operand.vmem [shape: f32[16,16], index: 0, kind: input, shape index: {}]
  %s1 = inlined_call_operand.vmem [shape: f32[3,16,4], index: 1, kind: input, shape index: {}]
  %s2 = inlined_call_operand.vmem [shape: f32[1,4], index: 2, kind: input, shape index: {}]
  %s3 = inlined_call_operand.vmem [shape: f32[1,4], index: 3, kind: input, shape index: {}]
  %s4 = inlined_call_operand.vmem [shape: f32[3,4,4], index: 4, kind: input, shape index: {}]
  %s5 = inlined_call_operand.vmem [shape: f32[1,4], index: 5, kind: input, shape index: {}]
  %s6 = inlined_call_operand.vmem [shape: f32[1,4], index: 6, kind: input, shape index: {}]
  %s7 = inlined_call_operand.vmem [shape: f32[3,4,16], index: 7, kind: input, shape index: {}]
  %s8 = inlined_call_operand.vmem [shape: f32[16,16], index: 8, kind: output, shape index: {}]
  %s9 = sld [smem:[#allocation0]]
  $region42: #{multi_scale_temporal_attention.4} parent=0
    _
  %s11 = ssub.s32 1, %s9
  %s12 = scalar_select 0, %s11, %s9
  // Predicated region
  $region2: #{multi_scale_temporal_attention.4} parent=0 // pred_check
    _
  $region3: #{multi_scale_temporal_attention.4} parent=0 // pred_check_branch
    %14 = sbr.rel (0) target = $region5
  $region4: #{multi_scale_temporal_attention.4} parent=0 // pred_region
    _
  $region5: #{multi_scale_temporal_attention.4} parent=0 // pred_fallthru
    _
  // Predicated region
  $region6: #{multi_scale_temporal_attention.4} parent=0 // pred_check
    _
  $region7: #{multi_scale_temporal_attention.4} parent=0 // pred_check_branch
    %16 = sbr.rel (0) target = $region9
  $region8: #{multi_scale_temporal_attention.4} parent=0 // pred_region
    _
  $region9: #{multi_scale_temporal_attention.4} parent=0 // pred_fallthru
    _
  // Predicated region
  $region10: #{multi_scale_temporal_attention.4} parent=0 // pred_check
    _
  $region11: #{multi_scale_temporal_attention.4} parent=0 // pred_check_branch
    %18 = sbr.rel (0) target = $region13
  $region12: #{multi_scale_temporal_attention.4} parent=0 // pred_region
    _
  $region13: #{multi_scale_temporal_attention.4} parent=0 // pred_fallthru
    _
  // Predicated region
  $region14: #{multi_scale_temporal_attention.4} parent=0 // pred_check
    _
  $region15: #{multi_scale_temporal_attention.4} parent=0 // pred_check_branch
    %20 = sbr.rel (0) target = $region17
  $region16: #{multi_scale_temporal_attention.4} parent=0 // pred_region
    _
  $region17: #{multi_scale_temporal_attention.4} parent=0 // pred_fallthru
    _
  // Predicated region
  $region18: #{multi_scale_temporal_attention.4} parent=0 // pred_check
    _
  $region19: #{multi_scale_temporal_attention.4} parent=0 // pred_check_branch
    %22 = sbr.rel (0) target = $region21
  $region20: #{multi_scale_temporal_attention.4} parent=0 // pred_region
    _
  $region21: #{multi_scale_temporal_attention.4} parent=0 // pred_fallthru
    _
  // Predicated region
  $region22: #{multi_scale_temporal_attention.4} parent=0 // pred_check
    _
  $region23: #{multi_scale_temporal_attention.4} parent=0 // pred_check_branch
    %24 = sbr.rel (0) target = $region25
  $region24: #{multi_scale_temporal_attention.4} parent=0 // pred_region
    _
  $region25: #{multi_scale_temporal_attention.4} parent=0 // pred_fallthru
    _
  // Predicated region
  $region26: #{multi_scale_temporal_attention.4} parent=0 // pred_check
    _
  $region27: #{multi_scale_temporal_attention.4} parent=0 // pred_check_branch
    %26 = sbr.rel (0) target = $region29
  $region28: #{multi_scale_temporal_attention.4} parent=0 // pred_region
    _
  $region29: #{multi_scale_temporal_attention.4} parent=0 // pred_fallthru
    _
  // Predicated region
  $region30: #{multi_scale_temporal_attention.4} parent=0 // pred_check
    _
  $region31: #{multi_scale_temporal_attention.4} parent=0 // pred_check_branch
    %28 = sbr.rel (0) target = $region33
  $region32: #{multi_scale_temporal_attention.4} parent=0 // pred_region
    _
  $region33: #{multi_scale_temporal_attention.4} parent=0 // pred_fallthru
    _
  %v29 = vld [vmem:[%s0] sm:$0xff]
  %v30 = vld [vmem:[%s0 + $0x8] sm:$0xff]
  %v31 = vmul.f32 %v29, 0.00390625
  %v32 = vmul.f32 %v30, 0.00390625
  %v33 = vlaneseq
  %v34 = vshrl.u32 %v33, 7
  %v35 = vadd.s32 %v34, 8
  %vm36 = vcmp.lt.s32.totalorder %v34, 0
  %v37 = vsub.s32 0, %v34
  %v38 = vsel %vm36, %v37, %v34
  %v39 = vshrl.u32 %v38, 3
  %v40 = vand.u32 %v38, 7
  %v41 = vsub.s32 0, %v40
  %v42 = vsel %vm36, %v41, %v40
  %vm43 = vcmp.lt.s32.totalorder %v35, 0
  %v44 = vsub.s32 0, %v35
  %v45 = vsel %vm43, %v44, %v35
  %v46 = vshrl.u32 %v45, 3
  %v47 = vand.u32 %v45, 7
  %v48 = vsub.s32 0, %v47
  %v49 = vsel %vm43, %v48, %v47
  %vm50 = vcmp.ne.s32.totalorder %v42, 0
  %vm51 = vcmp.ne.s32.totalorder %v49, 0
  %vm52 = vcmp.lt.s32.totalorder %v42, 0
  %vm53 = vcmp.lt.s32.totalorder %v49, 0
  %vm54 = vmand %vm52, %vm50
  %vm55 = vmand %vm53, %vm51
  %v56 = vadd.s32 %v42, 8
  %v57 = vadd.s32 %v49, 8
  %v58 = vsel %vm54, %v56, %v42
  %v59 = vsel %vm55, %v57, %v49
  %vm60 = vcmp.eq.s32.totalorder %v58, 0
  %vm61 = vcmp.eq.s32.totalorder %v59, 0
  %vm64 = vcmask 1040384
  %v65 = vrot.slane %v31, 7
  %v66 = vrot.slane %v32, 7
  %v67 = vsel %vm64, %v65, %v66
  %v70 = vsel %vm64, 0.0, %v65
  %v71 = vsel %vm60, 1, 0
  %v72 = vsel %vm61, 1, 0
  %vm73 = vcmp.eq.s32.totalorder %v71, 1
  %vm74 = vcmp.eq.s32.totalorder %v72, 1
  %v75 = vsel %vm73, 0.0, %v70
  %v76 = vsel %vm74, 0.0, %v67
  %vm77 = vcmp.eq.s32.totalorder %v58, 7
  %vm78 = vcmp.eq.s32.totalorder %v59, 7
  %vm79 = vcmask 1046528
  %v80 = vrot.slane %v31, 1
  %v81 = vrot.slane %v32, 1
  %v82 = vsel %vm79, %v80, %v81
  %v85 = vsel %vm79, %v81, 0.0
  %v86 = vsel %vm77, 1, 0
  %v87 = vsel %vm78, 1, 0
  %vm88 = vcmp.eq.s32.totalorder %v86, 1
  %vm89 = vcmp.eq.s32.totalorder %v87, 1
  %v90 = vsel %vm88, 0.0, %v82
  %v91 = vsel %vm89, 0.0, %v85
  %v92 = vld [vmem:[%s1] sm:$0xff]
  %v93 = vld [vmem:[%s1 + $0x8] sm:$0xff]
  %s94 = scalar_lea.vmem %s1, 16
  %v95 = vld [vmem:[%s94] sm:$0xff]
  %v96 = vld [vmem:[%s94 + $0x8] sm:$0xff]
  %vm97 = vcmask 130048
  %v98 = vsel %vm97, %v31, 0
  %v100 = vsel %vm97, %v32, 0
  %102 = vmatprep.subr.mxu0 0.0
  %103 = vmatpush1.msra.mxu0 %v95
  %104 = vmatprep.subr.mxu0 0.0
  %105 = vmatpush1.msra.mxu0 %v96
  %106 = vmatprep.subr.mxu0 0.0
  %107 = vmatpush1.msra.mxu0 0.0
  %108 = vmatprep.subr.mxu0 0.0
  %109 = vmatpush1.msra.mxu0 0.0
  %110 = vmatprep.subr.mxu0 0.0
  %111 = vmatpush1.msra.mxu0 0.0
  %112 = vmatprep.subr.mxu0 0.0
  %113 = vmatpush1.msra.mxu0 0.0
  %114 = vmatprep.subr.mxu0 0.0
  %115 = vmatpush1.msra.mxu0 0.0
  %116 = vmatprep.subr.mxu0 0.0
  %117 = vmatpush1.msra.mxu0 0.0
  %118 = vmatprep.subr.mxu0 0.0
  %119 = vmatpush1.msra.mxu0 0.0
  %120 = vmatprep.subr.mxu0 0.0
  %121 = vmatpush1.msra.mxu0 0.0
  %122 = vmatprep.subr.mxu0 0.0
  %123 = vmatpush1.msra.mxu0 0.0
  %124 = vmatprep.subr.mxu0 0.0
  %125 = vmatpush1.msra.mxu0 0.0
  %126 = vmatprep.subr.mxu0 0.0
  %127 = vmatpush1.msra.mxu0 0.0
  %128 = vmatprep.subr.mxu0 0.0
  %129 = vmatpush1.msra.mxu0 0.0
  %130 = vmatprep.subr.mxu0 0.0
  %131 = vmatpush1.msra.mxu0 0.0
  %132 = vmatprep.subr.mxu0 0.0
  %133 = vmatpush1.msra.mxu0 0.0
  %134 = vmatprep.subr.mxu0 0.0
  %135 = vmatpush1.msra.mxu0 0.0
  %136 = vmatprep.subr.mxu0 0.0
  %137 = vmatpush1.msra.mxu0 0.0
  %138 = vmatprep.subr.mxu0 0.0
  %139 = vmatpush1.msra.mxu0 0.0
  %140 = vmatprep.subr.mxu0 0.0
  %141 = vmatpush1.msra.mxu0 0.0
  %142 = vmatprep.subr.mxu0 0.0
  %143 = vmatpush1.msra.mxu0 0.0
  %144 = vmatprep.subr.mxu0 0.0
  %145 = vmatpush1.msra.mxu0 0.0
  %146 = vmatprep.subr.mxu0 0.0
  %147 = vmatpush1.msra.mxu0 0.0
  %148 = vmatprep.subr.mxu0 0.0
  %149 = vmatpush1.msra.mxu0 0.0
  %150 = vmatprep.subr.mxu0 0.0
  %151 = vmatpush1.msra.mxu0 0.0
  %152 = vmatprep.subr.mxu0 0.0
  %153 = vmatpush1.msra.mxu0 0.0
  %154 = vmatprep.subr.mxu0 0.0
  %155 = vmatpush1.msra.mxu0 0.0
  %156 = vmatprep.subr.mxu0 0.0
  %157 = vmatpush1.msra.mxu0 0.0
  %158 = vmatprep.subr.mxu0 0.0
  %159 = vmatpush1.msra.mxu0 0.0
  %160 = vmatprep.subr.mxu0 0.0
  %161 = vmatpush1.msra.mxu0 0.0
  %162 = vmatprep.subr.mxu0 0.0
  %163 = vmatpush1.msra.mxu0 0.0
  %164 = vmatprep.subr.mxu0 0.0
  %165 = vmatpush1.msra.mxu0 0.0
  %166 = vmatprep.mubr.f32.mxu0 0.0
  %167 = vmatmul.mubr.f32.gmra.mrb[0].mxu0 %v98
  %v168 = vpop.f32.mrb[0].mxu0
  %v169 = vadd.f32 0.0, %v168
  %v170 = vpop.f32.mrb[0].mxu0
  %171 = vmatprep.mubr.f32.mxu0 0.0
  %172 = vmatmul.mubr.f32.gmra.mrb[0].mxu0 %v100
  %v173 = vpop.f32.mrb[0].mxu0
  %v174 = vadd.f32 0.0, %v173
  %v175 = vpop.f32.mrb[0].mxu0
  %176 = vdwg.mxu0
  %v178 = vsel %vm97, %v75, 0
  %v181 = vsel %vm97, %v76, 0
  %183 = vmatprep.subr.mxu0 0.0
  %184 = vmatpush1.msra.mxu0 %v92
  %185 = vmatprep.subr.mxu0 0.0
  %186 = vmatpush1.msra.mxu0 %v93
  %187 = vmatprep.subr.mxu0 0.0
  %188 = vmatpush1.msra.mxu0 0.0
  %189 = vmatprep.subr.mxu0 0.0
  %190 = vmatpush1.msra.mxu0 0.0
  %191 = vmatprep.subr.mxu0 0.0
  %192 = vmatpush1.msra.mxu0 0.0
  %193 = vmatprep.subr.mxu0 0.0
  %194 = vmatpush1.msra.mxu0 0.0
  %195 = vmatprep.subr.mxu0 0.0
  %196 = vmatpush1.msra.mxu0 0.0
  %197 = vmatprep.subr.mxu0 0.0
  %198 = vmatpush1.msra.mxu0 0.0
  %199 = vmatprep.subr.mxu0 0.0
  %200 = vmatpush1.msra.mxu0 0.0
  %201 = vmatprep.subr.mxu0 0.0
  %202 = vmatpush1.msra.mxu0 0.0
  %203 = vmatprep.subr.mxu0 0.0
  %204 = vmatpush1.msra.mxu0 0.0
  %205 = vmatprep.subr.mxu0 0.0
  %206 = vmatpush1.msra.mxu0 0.0
  %207 = vmatprep.subr.mxu0 0.0
  %208 = vmatpush1.msra.mxu0 0.0
  %209 = vmatprep.subr.mxu0 0.0
  %210 = vmatpush1.msra.mxu0 0.0
  %211 = vmatprep.subr.mxu0 0.0
  %212 = vmatpush1.msra.mxu0 0.0
  %213 = vmatprep.subr.mxu0 0.0
  %214 = vmatpush1.msra.mxu0 0.0
  %215 = vmatprep.subr.mxu0 0.0
  %216 = vmatpush1.msra.mxu0 0.0
  %217 = vmatprep.subr.mxu0 0.0
  %218 = vmatpush1.msra.mxu0 0.0
  %219 = vmatprep.subr.mxu0 0.0
  %220 = vmatpush1.msra.mxu0 0.0
  %221 = vmatprep.subr.mxu0 0.0
  %222 = vmatpush1.msra.mxu0 0.0
  %223 = vmatprep.subr.mxu0 0.0
  %224 = vmatpush1.msra.mxu0 0.0
  %225 = vmatprep.subr.mxu0 0.0
  %226 = vmatpush1.msra.mxu0 0.0
  %227 = vmatprep.subr.mxu0 0.0
  %228 = vmatpush1.msra.mxu0 0.0
  %229 = vmatprep.subr.mxu0 0.0
  %230 = vmatpush1.msra.mxu0 0.0
  %231 = vmatprep.subr.mxu0 0.0
  %232 = vmatpush1.msra.mxu0 0.0
  %233 = vmatprep.subr.mxu0 0.0
  %234 = vmatpush1.msra.mxu0 0.0
  %235 = vmatprep.subr.mxu0 0.0
  %236 = vmatpush1.msra.mxu0 0.0
  %237 = vmatprep.subr.mxu0 0.0
  %238 = vmatpush1.msra.mxu0 0.0
  %239 = vmatprep.subr.mxu0 0.0
  %240 = vmatpush1.msra.mxu0 0.0
  %241 = vmatprep.subr.mxu0 0.0
  %242 = vmatpush1.msra.mxu0 0.0
  %243 = vmatprep.subr.mxu0 0.0
  %244 = vmatpush1.msra.mxu0 0.0
  %245 = vmatprep.subr.mxu0 0.0
  %246 = vmatpush1.msra.mxu0 0.0
  %247 = vmatprep.mubr.f32.mxu0 0.0
  %248 = vmatmul.mubr.f32.gmra.mrb[0].mxu0 %v178
  %v249 = vpop.f32.mrb[0].mxu0
  %v250 = vadd.f32 %v169, %v249
  %v251 = vpop.f32.mrb[0].mxu0
  %252 = vmatprep.mubr.f32.mxu0 0.0
  %253 = vmatmul.mubr.f32.gmra.mrb[0].mxu0 %v181
  %v254 = vpop.f32.mrb[0].mxu0
  %v255 = vadd.f32 %v174, %v254
  %v256 = vpop.f32.mrb[0].mxu0
  %257 = vdwg.mxu0
  %s258 = scalar_lea.vmem %s1, 32
  %v259 = vld [vmem:[%s258] sm:$0xff]
  %v260 = vld [vmem:[%s258 + $0x8] sm:$0xff]
  %v262 = vsel %vm97, %v90, 0
  %v265 = vsel %vm97, %v91, 0
  %267 = vmatprep.subr.mxu0 0.0
  %268 = vmatpush1.msra.mxu0 %v259
  %269 = vmatprep.subr.mxu0 0.0
  %270 = vmatpush1.msra.mxu0 %v260
  %271 = vmatprep.subr.mxu0 0.0
  %272 = vmatpush1.msra.mxu0 0.0
  %273 = vmatprep.subr.mxu0 0.0
  %274 = vmatpush1.msra.mxu0 0.0
  %275 = vmatprep.subr.mxu0 0.0
  %276 = vmatpush1.msra.mxu0 0.0
  %277 = vmatprep.subr.mxu0 0.0
  %278 = vmatpush1.msra.mxu0 0.0
  %279 = vmatprep.subr.mxu0 0.0
  %280 = vmatpush1.msra.mxu0 0.0
  %281 = vmatprep.subr.mxu0 0.0
  %282 = vmatpush1.msra.mxu0 0.0
  %283 = vmatprep.subr.mxu0 0.0
  %284 = vmatpush1.msra.mxu0 0.0
  %285 = vmatprep.subr.mxu0 0.0
  %286 = vmatpush1.msra.mxu0 0.0
  %287 = vmatprep.subr.mxu0 0.0
  %288 = vmatpush1.msra.mxu0 0.0
  %289 = vmatprep.subr.mxu0 0.0
  %290 = vmatpush1.msra.mxu0 0.0
  %291 = vmatprep.subr.mxu0 0.0
  %292 = vmatpush1.msra.mxu0 0.0
  %293 = vmatprep.subr.mxu0 0.0
  %294 = vmatpush1.msra.mxu0 0.0
  %295 = vmatprep.subr.mxu0 0.0
  %296 = vmatpush1.msra.mxu0 0.0
  %297 = vmatprep.subr.mxu0 0.0
  %298 = vmatpush1.msra.mxu0 0.0
  %299 = vmatprep.subr.mxu0 0.0
  %300 = vmatpush1.msra.mxu0 0.0
  %301 = vmatprep.subr.mxu0 0.0
  %302 = vmatpush1.msra.mxu0 0.0
  %303 = vmatprep.subr.mxu0 0.0
  %304 = vmatpush1.msra.mxu0 0.0
  %305 = vmatprep.subr.mxu0 0.0
  %306 = vmatpush1.msra.mxu0 0.0
  %307 = vmatprep.subr.mxu0 0.0
  %308 = vmatpush1.msra.mxu0 0.0
  %309 = vmatprep.subr.mxu0 0.0
  %310 = vmatpush1.msra.mxu0 0.0
  %311 = vmatprep.subr.mxu0 0.0
  %312 = vmatpush1.msra.mxu0 0.0
  %313 = vmatprep.subr.mxu0 0.0
  %314 = vmatpush1.msra.mxu0 0.0
  %315 = vmatprep.subr.mxu0 0.0
  %316 = vmatpush1.msra.mxu0 0.0
  %317 = vmatprep.subr.mxu0 0.0
  %318 = vmatpush1.msra.mxu0 0.0
  %319 = vmatprep.subr.mxu0 0.0
  %320 = vmatpush1.msra.mxu0 0.0
  %321 = vmatprep.subr.mxu0 0.0
  %322 = vmatpush1.msra.mxu0 0.0
  %323 = vmatprep.subr.mxu0 0.0
  %324 = vmatpush1.msra.mxu0 0.0
  %325 = vmatprep.subr.mxu0 0.0
  %326 = vmatpush1.msra.mxu0 0.0
  %327 = vmatprep.subr.mxu0 0.0
  %328 = vmatpush1.msra.mxu0 0.0
  %329 = vmatprep.subr.mxu0 0.0
  %330 = vmatpush1.msra.mxu0 0.0
  %331 = vmatprep.mubr.f32.mxu0 0.0
  %332 = vmatmul.mubr.f32.gmra.mrb[0].mxu0 %v262
  %v333 = vpop.f32.mrb[0].mxu0
  %v334 = vadd.f32 0.0, %v333
  %v335 = vpop.f32.mrb[0].mxu0
  %336 = vmatprep.mubr.f32.mxu0 0.0
  %337 = vmatmul.mubr.f32.gmra.mrb[0].mxu0 %v265
  %v338 = vpop.f32.mrb[0].mxu0
  %v339 = vadd.f32 0.0, %v338
  %v340 = vpop.f32.mrb[0].mxu0
  %341 = vdwg.mxu0
  %v342 = vadd.f32 %v250, %v334
  %v343 = vadd.f32 %v255, %v339
  %v344 = vld [vmem:[%s2] sm:$0x1]
  %v346 = vlaneseq
  %v347 = vshrl.u32 %v346, 7
  %v348 = vsub.s32 0, %v347
  %v349 = vrot.slane %v344, %v348
  %v351 = vmul.f32 %v342, %v349
  %v352 = vmul.f32 %v343, %v349
  %v353 = vld [vmem:[%s3] sm:$0x1]
  %v355 = vlaneseq
  %v356 = vshrl.u32 %v355, 7
  %v357 = vsub.s32 0, %v356
  %v358 = vrot.slane %v353, %v357
  %v360 = vadd.f32 %v351, %v358
  %v361 = vadd.f32 %v352, %v358
  %v362 = vmax.f32 %v360, 0.0
  %v363 = vmax.f32 %v361, 0.0
  %v366 = vrot.slane %v362, 7
  %v367 = vrot.slane %v363, 7
  %v368 = vsel %vm64, %v366, %v367
  %v371 = vsel %vm64, 0.0, %v366
  %v372 = vsel %vm73, 0.0, %v371
  %v373 = vsel %vm74, 0.0, %v368
  %v374 = vrot.slane %v362, 1
  %v375 = vrot.slane %v363, 1
  %v376 = vsel %vm79, %v374, %v375
  %v379 = vsel %vm79, %v375, 0.0
  %v380 = vsel %vm88, 0.0, %v376
  %v381 = vsel %vm89, 0.0, %v379
  %v382 = vld [vmem:[%s4] sm:$0xf]
  %s383 = scalar_lea.vmem %s4, 4
  %v384 = vld [vmem:[%s383] sm:$0xf]
  %vm385 = vcmask 31744
  %v386 = vsel %vm385, %v362, 0
  %v388 = vsel %vm385, %v363, 0
  %vm390 = vcmask 1043456
  %v392 = vsel %vm390, %v384, 0
  %394 = vmatprep.subr.mxu0 0.0
  %395 = vmatpush1.msra.mxu0 %v392
  %396 = vmatprep.subr.mxu0 0.0
  %397 = vmatpush1.msra.mxu0 0.0
  %398 = vmatprep.subr.mxu0 0.0
  %399 = vmatpush1.msra.mxu0 0.0
  %400 = vmatprep.subr.mxu0 0.0
  %401 = vmatpush1.msra.mxu0 0.0
  %402 = vmatprep.subr.mxu0 0.0
  %403 = vmatpush1.msra.mxu0 0.0
  %404 = vmatprep.subr.mxu0 0.0
  %405 = vmatpush1.msra.mxu0 0.0
  %406 = vmatprep.subr.mxu0 0.0
  %407 = vmatpush1.msra.mxu0 0.0
  %408 = vmatprep.subr.mxu0 0.0
  %409 = vmatpush1.msra.mxu0 0.0
  %410 = vmatprep.subr.mxu0 0.0
  %411 = vmatpush1.msra.mxu0 0.0
  %412 = vmatprep.subr.mxu0 0.0
  %413 = vmatpush1.msra.mxu0 0.0
  %414 = vmatprep.subr.mxu0 0.0
  %415 = vmatpush1.msra.mxu0 0.0
  %416 = vmatprep.subr.mxu0 0.0
  %417 = vmatpush1.msra.mxu0 0.0
  %418 = vmatprep.subr.mxu0 0.0
  %419 = vmatpush1.msra.mxu0 0.0
  %420 = vmatprep.subr.mxu0 0.0
  %421 = vmatpush1.msra.mxu0 0.0
  %422 = vmatprep.subr.mxu0 0.0
  %423 = vmatpush1.msra.mxu0 0.0
  %424 = vmatprep.subr.mxu0 0.0
  %425 = vmatpush1.msra.mxu0 0.0
  %426 = vmatprep.subr.mxu0 0.0
  %427 = vmatpush1.msra.mxu0 0.0
  %428 = vmatprep.subr.mxu0 0.0
  %429 = vmatpush1.msra.mxu0 0.0
  %430 = vmatprep.subr.mxu0 0.0
  %431 = vmatpush1.msra.mxu0 0.0
  %432 = vmatprep.subr.mxu0 0.0
  %433 = vmatpush1.msra.mxu0 0.0
  %434 = vmatprep.subr.mxu0 0.0
  %435 = vmatpush1.msra.mxu0 0.0
  %436 = vmatprep.subr.mxu0 0.0
  %437 = vmatpush1.msra.mxu0 0.0
  %438 = vmatprep.subr.mxu0 0.0
  %439 = vmatpush1.msra.mxu0 0.0
  %440 = vmatprep.subr.mxu0 0.0
  %441 = vmatpush1.msra.mxu0 0.0
  %442 = vmatprep.subr.mxu0 0.0
  %443 = vmatpush1.msra.mxu0 0.0
  %444 = vmatprep.subr.mxu0 0.0
  %445 = vmatpush1.msra.mxu0 0.0
  %446 = vmatprep.subr.mxu0 0.0
  %447 = vmatpush1.msra.mxu0 0.0
  %448 = vmatprep.subr.mxu0 0.0
  %449 = vmatpush1.msra.mxu0 0.0
  %450 = vmatprep.subr.mxu0 0.0
  %451 = vmatpush1.msra.mxu0 0.0
  %452 = vmatprep.subr.mxu0 0.0
  %453 = vmatpush1.msra.mxu0 0.0
  %454 = vmatprep.subr.mxu0 0.0
  %455 = vmatpush1.msra.mxu0 0.0
  %456 = vmatprep.subr.mxu0 0.0
  %457 = vmatpush1.msra.mxu0 0.0
  %458 = vmatprep.mubr.f32.mxu0 0.0
  %459 = vmatmul.mubr.f32.gmra.mrb[0].mxu0 %v386
  %v460 = vpop.f32.mrb[0].mxu0
  %v461 = vadd.f32 0.0, %v460
  %v462 = vpop.f32.mrb[0].mxu0
  %463 = vmatprep.mubr.f32.mxu0 0.0
  %464 = vmatmul.mubr.f32.gmra.mrb[0].mxu0 %v388
  %v465 = vpop.f32.mrb[0].mxu0
  %v466 = vadd.f32 0.0, %v465
  %v467 = vpop.f32.mrb[0].mxu0
  %468 = vdwg.mxu0
  %v470 = vsel %vm385, %v372, 0
  %v473 = vsel %vm385, %v373, 0
  %v476 = vsel %vm390, %v382, 0
  %478 = vmatprep.subr.mxu0 0.0
  %479 = vmatpush1.msra.mxu0 %v476
  %480 = vmatprep.subr.mxu0 0.0
  %481 = vmatpush1.msra.mxu0 0.0
  %482 = vmatprep.subr.mxu0 0.0
  %483 = vmatpush1.msra.mxu0 0.0
  %484 = vmatprep.subr.mxu0 0.0
  %485 = vmatpush1.msra.mxu0 0.0
  %486 = vmatprep.subr.mxu0 0.0
  %487 = vmatpush1.msra.mxu0 0.0
  %488 = vmatprep.subr.mxu0 0.0
  %489 = vmatpush1.msra.mxu0 0.0
  %490 = vmatprep.subr.mxu0 0.0
  %491 = vmatpush1.msra.mxu0 0.0
  %492 = vmatprep.subr.mxu0 0.0
  %493 = vmatpush1.msra.mxu0 0.0
  %494 = vmatprep.subr.mxu0 0.0
  %495 = vmatpush1.msra.mxu0 0.0
  %496 = vmatprep.subr.mxu0 0.0
  %497 = vmatpush1.msra.mxu0 0.0
  %498 = vmatprep.subr.mxu0 0.0
  %499 = vmatpush1.msra.mxu0 0.0
  %500 = vmatprep.subr.mxu0 0.0
  %501 = vmatpush1.msra.mxu0 0.0
  %502 = vmatprep.subr.mxu0 0.0
  %503 = vmatpush1.msra.mxu0 0.0
  %504 = vmatprep.subr.mxu0 0.0
  %505 = vmatpush1.msra.mxu0 0.0
  %506 = vmatprep.subr.mxu0 0.0
  %507 = vmatpush1.msra.mxu0 0.0
  %508 = vmatprep.subr.mxu0 0.0
  %509 = vmatpush1.msra.mxu0 0.0
  %510 = vmatprep.subr.mxu0 0.0
  %511 = vmatpush1.msra.mxu0 0.0
  %512 = vmatprep.subr.mxu0 0.0
  %513 = vmatpush1.msra.mxu0 0.0
  %514 = vmatprep.subr.mxu0 0.0
  %515 = vmatpush1.msra.mxu0 0.0
  %516 = vmatprep.subr.mxu0 0.0
  %517 = vmatpush1.msra.mxu0 0.0
  %518 = vmatprep.subr.mxu0 0.0
  %519 = vmatpush1.msra.mxu0 0.0
  %520 = vmatprep.subr.mxu0 0.0
  %521 = vmatpush1.msra.mxu0 0.0
  %522 = vmatprep.subr.mxu0 0.0
  %523 = vmatpush1.msra.mxu0 0.0
  %524 = vmatprep.subr.mxu0 0.0
  %525 = vmatpush1.msra.mxu0 0.0
  %526 = vmatprep.subr.mxu0 0.0
  %527 = vmatpush1.msra.mxu0 0.0
  %528 = vmatprep.subr.mxu0 0.0
  %529 = vmatpush1.msra.mxu0 0.0
  %530 = vmatprep.subr.mxu0 0.0
  %531 = vmatpush1.msra.mxu0 0.0
  %532 = vmatprep.subr.mxu0 0.0
  %533 = vmatpush1.msra.mxu0 0.0
  %534 = vmatprep.subr.mxu0 0.0
  %535 = vmatpush1.msra.mxu0 0.0
  %536 = vmatprep.subr.mxu0 0.0
  %537 = vmatpush1.msra.mxu0 0.0
  %538 = vmatprep.subr.mxu0 0.0
  %539 = vmatpush1.msra.mxu0 0.0
  %540 = vmatprep.subr.mxu0 0.0
  %541 = vmatpush1.msra.mxu0 0.0
  %542 = vmatprep.mubr.f32.mxu0 0.0
  %543 = vmatmul.mubr.f32.gmra.mrb[0].mxu0 %v470
  %v544 = vpop.f32.mrb[0].mxu0
  %v545 = vadd.f32 %v461, %v544
  %v546 = vpop.f32.mrb[0].mxu0
  %547 = vmatprep.mubr.f32.mxu0 0.0
  %548 = vmatmul.mubr.f32.gmra.mrb[0].mxu0 %v473
  %v549 = vpop.f32.mrb[0].mxu0
  %v550 = vadd.f32 %v466, %v549
  %v551 = vpop.f32.mrb[0].mxu0
  %552 = vdwg.mxu0
  %s553 = scalar_lea.vmem %s4, 8
  %v554 = vld [vmem:[%s553] sm:$0xf]
  %v556 = vsel %vm385, %v380, 0
  %v559 = vsel %vm385, %v381, 0
  %v562 = vsel %vm390, %v554, 0
  %564 = vmatprep.subr.mxu0 0.0
  %565 = vmatpush1.msra.mxu0 %v562
  %566 = vmatprep.subr.mxu0 0.0
  %567 = vmatpush1.msra.mxu0 0.0
  %568 = vmatprep.subr.mxu0 0.0
  %569 = vmatpush1.msra.mxu0 0.0
  %570 = vmatprep.subr.mxu0 0.0
  %571 = vmatpush1.msra.mxu0 0.0
  %572 = vmatprep.subr.mxu0 0.0
  %573 = vmatpush1.msra.mxu0 0.0
  %574 = vmatprep.subr.mxu0 0.0
  %575 = vmatpush1.msra.mxu0 0.0
  %576 = vmatprep.subr.mxu0 0.0
  %577 = vmatpush1.msra.mxu0 0.0
  %578 = vmatprep.subr.mxu0 0.0
  %579 = vmatpush1.msra.mxu0 0.0
  %580 = vmatprep.subr.mxu0 0.0
  %581 = vmatpush1.msra.mxu0 0.0
  %582 = vmatprep.subr.mxu0 0.0
  %583 = vmatpush1.msra.mxu0 0.0
  %584 = vmatprep.subr.mxu0 0.0
  %585 = vmatpush1.msra.mxu0 0.0
  %586 = vmatprep.subr.mxu0 0.0
  %587 = vmatpush1.msra.mxu0 0.0
  %588 = vmatprep.subr.mxu0 0.0
  %589 = vmatpush1.msra.mxu0 0.0
  %590 = vmatprep.subr.mxu0 0.0
  %591 = vmatpush1.msra.mxu0 0.0
  %592 = vmatprep.subr.mxu0 0.0
  %593 = vmatpush1.msra.mxu0 0.0
  %594 = vmatprep.subr.mxu0 0.0
  %595 = vmatpush1.msra.mxu0 0.0
  %596 = vmatprep.subr.mxu0 0.0
  %597 = vmatpush1.msra.mxu0 0.0
  %598 = vmatprep.subr.mxu0 0.0
  %599 = vmatpush1.msra.mxu0 0.0
  %600 = vmatprep.subr.mxu0 0.0
  %601 = vmatpush1.msra.mxu0 0.0
  %602 = vmatprep.subr.mxu0 0.0
  %603 = vmatpush1.msra.mxu0 0.0
  %604 = vmatprep.subr.mxu0 0.0
  %605 = vmatpush1.msra.mxu0 0.0
  %606 = vmatprep.subr.mxu0 0.0
  %607 = vmatpush1.msra.mxu0 0.0
  %608 = vmatprep.subr.mxu0 0.0
  %609 = vmatpush1.msra.mxu0 0.0
  %610 = vmatprep.subr.mxu0 0.0
  %611 = vmatpush1.msra.mxu0 0.0
  %612 = vmatprep.subr.mxu0 0.0
  %613 = vmatpush1.msra.mxu0 0.0
  %614 = vmatprep.subr.mxu0 0.0
  %615 = vmatpush1.msra.mxu0 0.0
  %616 = vmatprep.subr.mxu0 0.0
  %617 = vmatpush1.msra.mxu0 0.0
  %618 = vmatprep.subr.mxu0 0.0
  %619 = vmatpush1.msra.mxu0 0.0
  %620 = vmatprep.subr.mxu0 0.0
  %621 = vmatpush1.msra.mxu0 0.0
  %622 = vmatprep.subr.mxu0 0.0
  %623 = vmatpush1.msra.mxu0 0.0
  %624 = vmatprep.subr.mxu0 0.0
  %625 = vmatpush1.msra.mxu0 0.0
  %626 = vmatprep.subr.mxu0 0.0
  %627 = vmatpush1.msra.mxu0 0.0
  %628 = vmatprep.mubr.f32.mxu0 0.0
  %629 = vmatmul.mubr.f32.gmra.mrb[0].mxu0 %v556
  %v630 = vpop.f32.mrb[0].mxu0
  %v631 = vadd.f32 0.0, %v630
  %v632 = vpop.f32.mrb[0].mxu0
  %633 = vmatprep.mubr.f32.mxu0 0.0
  %634 = vmatmul.mubr.f32.gmra.mrb[0].mxu0 %v559
  %v635 = vpop.f32.mrb[0].mxu0
  %v636 = vadd.f32 0.0, %v635
  %v637 = vpop.f32.mrb[0].mxu0
  %638 = vdwg.mxu0
  %v639 = vadd.f32 %v545, %v631
  %v640 = vadd.f32 %v550, %v636
  %v641 = vld [vmem:[%s5] sm:$0x1]
  %v643 = vlaneseq
  %v644 = vshrl.u32 %v643, 7
  %v645 = vsub.s32 0, %v644
  %v646 = vrot.slane %v641, %v645
  %v648 = vmul.f32 %v639, %v646
  %v649 = vmul.f32 %v640, %v646
  %v650 = vld [vmem:[%s6] sm:$0x1]
  %v652 = vlaneseq
  %v653 = vshrl.u32 %v652, 7
  %v654 = vsub.s32 0, %v653
  %v655 = vrot.slane %v650, %v654
  %v657 = vadd.f32 %v648, %v655
  %v658 = vadd.f32 %v649, %v655
  %v659 = vmax.f32 %v657, 0.0
  %v660 = vmax.f32 %v658, 0.0
  %v661 = vadd.f32 %v659, %v362
  %v662 = vadd.f32 %v660, %v363
  %v665 = vrot.slane %v661, 7
  %v666 = vrot.slane %v662, 7
  %v667 = vsel %vm64, %v665, %v666
  %v670 = vsel %vm64, 0.0, %v665
  %v671 = vsel %vm73, 0.0, %v670
  %v672 = vsel %vm74, 0.0, %v667
  %v673 = vrot.slane %v661, 1
  %v674 = vrot.slane %v662, 1
  %v675 = vsel %vm79, %v673, %v674
  %v678 = vsel %vm79, %v674, 0.0
  %v679 = vsel %vm88, 0.0, %v675
  %v680 = vsel %vm89, 0.0, %v678
  %v681 = vld [vmem:[%s7] sm:$0xf]
  %s682 = scalar_lea.vmem %s7, 4
  %v683 = vld [vmem:[%s682] sm:$0xf]
  %v684 = vsel %vm385, %v661, 0
  %v686 = vsel %vm385, %v662, 0
  %v689 = vsel %vm390, %v683, 0
  %691 = vmatprep.subr.mxu0 0.0
  %692 = vmatpush1.msra.mxu0 %v689
  %693 = vmatprep.subr.mxu0 0.0
  %694 = vmatpush1.msra.mxu0 0.0
  %695 = vmatprep.subr.mxu0 0.0
  %696 = vmatpush1.msra.mxu0 0.0
  %697 = vmatprep.subr.mxu0 0.0
  %698 = vmatpush1.msra.mxu0 0.0
  %699 = vmatprep.subr.mxu0 0.0
  %700 = vmatpush1.msra.mxu0 0.0
  %701 = vmatprep.subr.mxu0 0.0
  %702 = vmatpush1.msra.mxu0 0.0
  %703 = vmatprep.subr.mxu0 0.0
  %704 = vmatpush1.msra.mxu0 0.0
  %705 = vmatprep.subr.mxu0 0.0
  %706 = vmatpush1.msra.mxu0 0.0
  %707 = vmatprep.subr.mxu0 0.0
  %708 = vmatpush1.msra.mxu0 0.0
  %709 = vmatprep.subr.mxu0 0.0
  %710 = vmatpush1.msra.mxu0 0.0
  %711 = vmatprep.subr.mxu0 0.0
  %712 = vmatpush1.msra.mxu0 0.0
  %713 = vmatprep.subr.mxu0 0.0
  %714 = vmatpush1.msra.mxu0 0.0
  %715 = vmatprep.subr.mxu0 0.0
  %716 = vmatpush1.msra.mxu0 0.0
  %717 = vmatprep.subr.mxu0 0.0
  %718 = vmatpush1.msra.mxu0 0.0
  %719 = vmatprep.subr.mxu0 0.0
  %720 = vmatpush1.msra.mxu0 0.0
  %721 = vmatprep.subr.mxu0 0.0
  %722 = vmatpush1.msra.mxu0 0.0
  %723 = vmatprep.subr.mxu0 0.0
  %724 = vmatpush1.msra.mxu0 0.0
  %725 = vmatprep.subr.mxu0 0.0
  %726 = vmatpush1.msra.mxu0 0.0
  %727 = vmatprep.subr.mxu0 0.0
  %728 = vmatpush1.msra.mxu0 0.0
  %729 = vmatprep.subr.mxu0 0.0
  %730 = vmatpush1.msra.mxu0 0.0
  %731 = vmatprep.subr.mxu0 0.0
  %732 = vmatpush1.msra.mxu0 0.0
  %733 = vmatprep.subr.mxu0 0.0
  %734 = vmatpush1.msra.mxu0 0.0
  %735 = vmatprep.subr.mxu0 0.0
  %736 = vmatpush1.msra.mxu0 0.0
  %737 = vmatprep.subr.mxu0 0.0
  %738 = vmatpush1.msra.mxu0 0.0
  %739 = vmatprep.subr.mxu0 0.0
  %740 = vmatpush1.msra.mxu0 0.0
  %741 = vmatprep.subr.mxu0 0.0
  %742 = vmatpush1.msra.mxu0 0.0
  %743 = vmatprep.subr.mxu0 0.0
  %744 = vmatpush1.msra.mxu0 0.0
  %745 = vmatprep.subr.mxu0 0.0
  %746 = vmatpush1.msra.mxu0 0.0
  %747 = vmatprep.subr.mxu0 0.0
  %748 = vmatpush1.msra.mxu0 0.0
  %749 = vmatprep.subr.mxu0 0.0
  %750 = vmatpush1.msra.mxu0 0.0
  %751 = vmatprep.subr.mxu0 0.0
  %752 = vmatpush1.msra.mxu0 0.0
  %753 = vmatprep.subr.mxu0 0.0
  %754 = vmatpush1.msra.mxu0 0.0
  %755 = vmatprep.mubr.f32.mxu0 0.0
  %756 = vmatmul.mubr.f32.gmra.mrb[0].mxu0 %v684
  %v757 = vpop.f32.mrb[0].mxu0
  %v758 = vadd.f32 0.0, %v757
  %v759 = vpop.f32.mrb[0].mxu0
  %760 = vmatprep.mubr.f32.mxu0 0.0
  %761 = vmatmul.mubr.f32.gmra.mrb[0].mxu0 %v686
  %v762 = vpop.f32.mrb[0].mxu0
  %v763 = vadd.f32 0.0, %v762
  %v764 = vpop.f32.mrb[0].mxu0
  %765 = vdwg.mxu0
  %v767 = vsel %vm385, %v671, 0
  %v770 = vsel %vm385, %v672, 0
  %v773 = vsel %vm390, %v681, 0
  %775 = vmatprep.subr.mxu0 0.0
  %776 = vmatpush1.msra.mxu0 %v773
  %777 = vmatprep.subr.mxu0 0.0
  %778 = vmatpush1.msra.mxu0 0.0
  %779 = vmatprep.subr.mxu0 0.0
  %780 = vmatpush1.msra.mxu0 0.0
  %781 = vmatprep.subr.mxu0 0.0
  %782 = vmatpush1.msra.mxu0 0.0
  %783 = vmatprep.subr.mxu0 0.0
  %784 = vmatpush1.msra.mxu0 0.0
  %785 = vmatprep.subr.mxu0 0.0
  %786 = vmatpush1.msra.mxu0 0.0
  %787 = vmatprep.subr.mxu0 0.0
  %788 = vmatpush1.msra.mxu0 0.0
  %789 = vmatprep.subr.mxu0 0.0
  %790 = vmatpush1.msra.mxu0 0.0
  %791 = vmatprep.subr.mxu0 0.0
  %792 = vmatpush1.msra.mxu0 0.0
  %793 = vmatprep.subr.mxu0 0.0
  %794 = vmatpush1.msra.mxu0 0.0
  %795 = vmatprep.subr.mxu0 0.0
  %796 = vmatpush1.msra.mxu0 0.0
  %797 = vmatprep.subr.mxu0 0.0
  %798 = vmatpush1.msra.mxu0 0.0
  %799 = vmatprep.subr.mxu0 0.0
  %800 = vmatpush1.msra.mxu0 0.0
  %801 = vmatprep.subr.mxu0 0.0
  %802 = vmatpush1.msra.mxu0 0.0
  %803 = vmatprep.subr.mxu0 0.0
  %804 = vmatpush1.msra.mxu0 0.0
  %805 = vmatprep.subr.mxu0 0.0
  %806 = vmatpush1.msra.mxu0 0.0
  %807 = vmatprep.subr.mxu0 0.0
  %808 = vmatpush1.msra.mxu0 0.0
  %809 = vmatprep.subr.mxu0 0.0
  %810 = vmatpush1.msra.mxu0 0.0
  %811 = vmatprep.subr.mxu0 0.0
  %812 = vmatpush1.msra.mxu0 0.0
  %813 = vmatprep.subr.mxu0 0.0
  %814 = vmatpush1.msra.mxu0 0.0
  %815 = vmatprep.subr.mxu0 0.0
  %816 = vmatpush1.msra.mxu0 0.0
  %817 = vmatprep.subr.mxu0 0.0
  %818 = vmatpush1.msra.mxu0 0.0
  %819 = vmatprep.subr.mxu0 0.0
  %820 = vmatpush1.msra.mxu0 0.0
  %821 = vmatprep.subr.mxu0 0.0
  %822 = vmatpush1.msra.mxu0 0.0
  %823 = vmatprep.subr.mxu0 0.0
  %824 = vmatpush1.msra.mxu0 0.0
  %825 = vmatprep.subr.mxu0 0.0
  %826 = vmatpush1.msra.mxu0 0.0
  %827 = vmatprep.subr.mxu0 0.0
  %828 = vmatpush1.msra.mxu0 0.0
  %829 = vmatprep.subr.mxu0 0.0
  %830 = vmatpush1.msra.mxu0 0.0
  %831 = vmatprep.subr.mxu0 0.0
  %832 = vmatpush1.msra.mxu0 0.0
  %833 = vmatprep.subr.mxu0 0.0
  %834 = vmatpush1.msra.mxu0 0.0
  %835 = vmatprep.subr.mxu0 0.0
  %836 = vmatpush1.msra.mxu0 0.0
  %837 = vmatprep.subr.mxu0 0.0
  %838 = vmatpush1.msra.mxu0 0.0
  %839 = vmatprep.mubr.f32.mxu0 0.0
  %840 = vmatmul.mubr.f32.gmra.mrb[0].mxu0 %v767
  %v841 = vpop.f32.mrb[0].mxu0
  %v842 = vadd.f32 %v758, %v841
  %v843 = vpop.f32.mrb[0].mxu0
  %844 = vmatprep.mubr.f32.mxu0 0.0
  %845 = vmatmul.mubr.f32.gmra.mrb[0].mxu0 %v770
  %v846 = vpop.f32.mrb[0].mxu0
  %v847 = vadd.f32 %v763, %v846
  %v848 = vpop.f32.mrb[0].mxu0
  %849 = vdwg.mxu0
  %s850 = scalar_lea.vmem %s7, 8
  %v851 = vld [vmem:[%s850] sm:$0xf]
  %v853 = vsel %vm385, %v679, 0
  %v856 = vsel %vm385, %v680, 0
  %v859 = vsel %vm390, %v851, 0
  %861 = vmatprep.subr.mxu0 0.0
  %862 = vmatpush1.msra.mxu0 %v859
  %863 = vmatprep.subr.mxu0 0.0
  %864 = vmatpush1.msra.mxu0 0.0
  %865 = vmatprep.subr.mxu0 0.0
  %866 = vmatpush1.msra.mxu0 0.0
  %867 = vmatprep.subr.mxu0 0.0
  %868 = vmatpush1.msra.mxu0 0.0
  %869 = vmatprep.subr.mxu0 0.0
  %870 = vmatpush1.msra.mxu0 0.0
  %871 = vmatprep.subr.mxu0 0.0
  %872 = vmatpush1.msra.mxu0 0.0
  %873 = vmatprep.subr.mxu0 0.0
  %874 = vmatpush1.msra.mxu0 0.0
  %875 = vmatprep.subr.mxu0 0.0
  %876 = vmatpush1.msra.mxu0 0.0
  %877 = vmatprep.subr.mxu0 0.0
  %878 = vmatpush1.msra.mxu0 0.0
  %879 = vmatprep.subr.mxu0 0.0
  %880 = vmatpush1.msra.mxu0 0.0
  %881 = vmatprep.subr.mxu0 0.0
  %882 = vmatpush1.msra.mxu0 0.0
  %883 = vmatprep.subr.mxu0 0.0
  %884 = vmatpush1.msra.mxu0 0.0
  %885 = vmatprep.subr.mxu0 0.0
  %886 = vmatpush1.msra.mxu0 0.0
  %887 = vmatprep.subr.mxu0 0.0
  %888 = vmatpush1.msra.mxu0 0.0
  %889 = vmatprep.subr.mxu0 0.0
  %890 = vmatpush1.msra.mxu0 0.0
  %891 = vmatprep.subr.mxu0 0.0
  %892 = vmatpush1.msra.mxu0 0.0
  %893 = vmatprep.subr.mxu0 0.0
  %894 = vmatpush1.msra.mxu0 0.0
  %895 = vmatprep.subr.mxu0 0.0
  %896 = vmatpush1.msra.mxu0 0.0
  %897 = vmatprep.subr.mxu0 0.0
  %898 = vmatpush1.msra.mxu0 0.0
  %899 = vmatprep.subr.mxu0 0.0
  %900 = vmatpush1.msra.mxu0 0.0
  %901 = vmatprep.subr.mxu0 0.0
  %902 = vmatpush1.msra.mxu0 0.0
  %903 = vmatprep.subr.mxu0 0.0
  %904 = vmatpush1.msra.mxu0 0.0
  %905 = vmatprep.subr.mxu0 0.0
  %906 = vmatpush1.msra.mxu0 0.0
  %907 = vmatprep.subr.mxu0 0.0
  %908 = vmatpush1.msra.mxu0 0.0
  %909 = vmatprep.subr.mxu0 0.0
  %910 = vmatpush1.msra.mxu0 0.0
  %911 = vmatprep.subr.mxu0 0.0
  %912 = vmatpush1.msra.mxu0 0.0
  %913 = vmatprep.subr.mxu0 0.0
  %914 = vmatpush1.msra.mxu0 0.0
  %915 = vmatprep.subr.mxu0 0.0
  %916 = vmatpush1.msra.mxu0 0.0
  %917 = vmatprep.subr.mxu0 0.0
  %918 = vmatpush1.msra.mxu0 0.0
  %919 = vmatprep.subr.mxu0 0.0
  %920 = vmatpush1.msra.mxu0 0.0
  %921 = vmatprep.subr.mxu0 0.0
  %922 = vmatpush1.msra.mxu0 0.0
  %923 = vmatprep.subr.mxu0 0.0
  %924 = vmatpush1.msra.mxu0 0.0
  %925 = vmatprep.mubr.f32.mxu0 0.0
  %926 = vmatmul.mubr.f32.gmra.mrb[0].mxu0 %v853
  %v927 = vpop.f32.mrb[0].mxu0
  %v928 = vadd.f32 0.0, %v927
  %v929 = vpop.f32.mrb[0].mxu0
  %930 = vmatprep.mubr.f32.mxu0 0.0
  %931 = vmatmul.mubr.f32.gmra.mrb[0].mxu0 %v856
  %v932 = vpop.f32.mrb[0].mxu0
  %v933 = vadd.f32 0.0, %v932
  %v934 = vpop.f32.mrb[0].mxu0
  %935 = vdwg.mxu0
  %v936 = vadd.f32 %v842, %v928
  %v937 = vadd.f32 %v847, %v933
  %v938 = vxor.u32 %v936, 2147483648
  %v939 = vxor.u32 %v937, 2147483648
  %v940 = vmul.f32 %v938, 1.442695
  %v941 = vpow.pop %v940
  %v942 = vmul.f32 %v939, 1.442695
  %v943 = vpow.pop %v942
  %v944 = vadd.f32 %v941, 1.0
  %v945 = vadd.f32 %v943, 1.0
  %v946 = vrcp.pop %v944
  %v947 = vmul.f32 1.0, %v946
  %v948 = vrcp.pop %v945
  %v949 = vmul.f32 1.0, %v948
  %v950 = vsub.f32 %v947, 0.5
  %v951 = vsub.f32 %v949, 0.5
  %952 = vst.msk [vmem:[%s8] sm:$0xff] %vm97, %v950
  %953 = vst.msk [vmem:[%s8 + $0x8] sm:$0xff] %vm97, %v951
  // Predicated region
  $region34: #{multi_scale_temporal_attention.4} parent=0 // pred_check
    _
  $region35: #{multi_scale_temporal_attention.4} parent=0 // pred_check_branch
    %955 = sbr.rel (0) target = $region37
  $region36: #{multi_scale_temporal_attention.4} parent=0 // pred_region
    _
  $region37: #{multi_scale_temporal_attention.4} parent=0 // pred_fallthru
    _
  // Predicated region
  $region38: #{multi_scale_temporal_attention.4} parent=0 // pred_check
    _
  $region39: #{multi_scale_temporal_attention.4} parent=0 // pred_check_branch
    %957 = sbr.rel (0) target = $region41
  $region40: #{multi_scale_temporal_attention.4} parent=0 // pred_region
    _
  $region41: #{multi_scale_temporal_attention.4} parent=0 // pred_fallthru
    _

</llo_original>
